<compile_context>
chip_gen: v7x
topology: tpu7x:2x2x1
jax: 0.10.0
libtpu: 0.0.40
codegen_flags: <defaults>
</compile_context>

<pallas_src>
import math
from functools import partial

import jax
import jax.numpy as jnp
from jax.experimental import pallas as pl
from jax.experimental.pallas import tpu as pltpu


# ------------------------------ helpers -------------------------------------

_VMEM_LIMIT = None


def _vmem_limit_bytes():
    """Generation-aware scoped-VMEM limit: ~3/4 of physical VMEM, capped."""
    global _VMEM_LIMIT
    if _VMEM_LIMIT is None:
        cap = 64 * 1024 * 1024          # conservative fallback (v7x-sized)
        try:
            info = pltpu.get_tpu_info()
            cap = int(getattr(info, "vmem_capacity_bytes", cap) or cap)
        except Exception:
            pass
        _VMEM_LIMIT = int(min(cap * 3 // 4, 100 * 1024 * 1024))
    return _VMEM_LIMIT


def _tile(dim, cap, base):
    """Largest multiple-of-`base` tile <= cap that evenly divides dim.
    Returns dim itself when it already fits under the cap (full-extent block)."""
    if dim <= cap:
        return dim
    t = (cap // base) * base
    while t > base and dim % t != 0:
        t -= base
    return t if t > 0 and dim % t == 0 else dim


def _heads_per_block(n_head, d_head):
    """Smallest divisor of n_head whose lane width (hpb * d_head) is >= 128."""
    for hpb in range(1, n_head + 1):
        if n_head % hpb == 0 and hpb * d_head >= 128:
            return hpb
    return n_head


# --------------------------- fused linear kernels ----------------------------

def _ln_linear_kernel(x_ref, g_ref, b_ref, w_ref, bias_ref, o_ref):
    # y = LayerNorm(x) @ W + bias     (used for ln_1 + c_attn)
    x = x_ref[...].astype(jnp.float32)                    # (tm, K)
    mu = jnp.mean(x, axis=-1, keepdims=True)
    var = jnp.mean(jnp.square(x - mu), axis=-1, keepdims=True)
    xn = (x - mu) * jax.lax.rsqrt(var + 1e-5) * g_ref[...] + b_ref[...]
    y = jnp.dot(xn.astype(jnp.bfloat16), w_ref[...],
                preferred_element_type=jnp.float32) + bias_ref[...]
    o_ref[...] = y.astype(o_ref.dtype)


def ln_linear(x, ln_g, ln_b, w_bf16, b, *, tm_cap=256):
    M, K = x.shape
    N = w_bf16.shape[1]
    tm = _tile(M, tm_cap, 8)
    return pl.pallas_call(
        _ln_linear_kernel,
        out_shape=jax.ShapeDtypeStruct((M, N), jnp.bfloat16),
        grid=(M // tm,),
        in_specs=[
            pl.BlockSpec((tm, K), lambda i: (i, 0)),
            pl.BlockSpec((1, K), lambda i: (0, 0)),
            pl.BlockSpec((1, K), lambda i: (0, 0)),
            pl.BlockSpec((K, N), lambda i: (0, 0)),   # full-N: weight resident, DMA'd once
            pl.BlockSpec((1, N), lambda i: (0, 0)),
        ],
        out_specs=pl.BlockSpec((tm, N), lambda i: (i, 0)),
        compiler_params=pltpu.CompilerParams(
            dimension_semantics=("parallel",),
            vmem_limit_bytes=_vmem_limit_bytes()),
    )(x, ln_g.reshape(1, K), ln_b.reshape(1, K), w_bf16, b.reshape(1, N))


def _linear_residual_kernel(x_ref, w_ref, bias_ref, r_ref, o_ref):
    # y = resid + x @ W + bias   (attn c_proj fused with residual add)
    y = jnp.dot(x_ref[...], w_ref[...], preferred_element_type=jnp.float32)
    o_ref[...] = (r_ref[...].astype(jnp.float32) + y + bias_ref[...]).astype(o_ref.dtype)


def linear_residual(x, w_bf16, b, resid, *, tm_cap=256):
    M, K = x.shape
    N = w_bf16.shape[1]
    tm = _tile(M, tm_cap, 8)
    return pl.pallas_call(
        _linear_residual_kernel,
        out_shape=jax.ShapeDtypeStruct((M, N), jnp.bfloat16),
        grid=(M // tm,),
        in_specs=[
            pl.BlockSpec((tm, K), lambda i: (i, 0)),
            pl.BlockSpec((K, N), lambda i: (0, 0)),   # full-N: weight resident
            pl.BlockSpec((1, N), lambda i: (0, 0)),
            pl.BlockSpec((tm, N), lambda i: (i, 0)),
        ],
        out_specs=pl.BlockSpec((tm, N), lambda i: (i, 0)),
        input_output_aliases={3: 0},                  # new residual written in place
        compiler_params=pltpu.CompilerParams(
            dimension_semantics=("parallel",),
            vmem_limit_bytes=_vmem_limit_bytes()),
    )(x, w_bf16, b.reshape(1, N), resid)


# ------------------------------ fused MLP ------------------------------------
# ln_2 -> c_fc -> gelu_new -> c_proj -> +residual in ONE kernel.
# Grid = (M tiles [parallel], FF tiles [arbitrary reduction]); the (tm, tf)
# gelu intermediate lives only in VMEM/vregs and the f32 accumulator carries
# the partial c_proj sum across FF tiles (P3 pattern).

def _mlp_kernel(x_ref, g_ref, b_ref, wfc_ref, bfc_ref, wpj_ref, bpj_ref,
                o_ref, acc_ref, xn_ref):
    j = pl.program_id(1)

    @pl.when(j == 0)
    def _():
        x = x_ref[...].astype(jnp.float32)
        mu = jnp.mean(x, axis=-1, keepdims=True)
        var = jnp.mean(jnp.square(x - mu), axis=-1, keepdims=True)
        xn = (x - mu) * jax.lax.rsqrt(var + 1e-5) * g_ref[...] + b_ref[...]
        xn_ref[...] = xn.astype(jnp.bfloat16)          # LN computed once per row tile
        acc_ref[...] = jnp.zeros_like(acc_ref)

    h = jnp.dot(xn_ref[...], wfc_ref[...],
                preferred_element_type=jnp.float32) + bfc_ref[...]
    c = 0.7978845608028654                             # sqrt(2/pi), gelu_new
    h = 0.5 * h * (1.0 + jnp.tanh(c * (h + 0.044715 * h * h * h)))
    acc_ref[...] += jnp.dot(h.astype(jnp.bfloat16), wpj_ref[...],
                            preferred_element_type=jnp.float32)

    @pl.when(j == pl.num_programs(1) - 1)
    def _():
        o_ref[...] = (acc_ref[...] + bpj_ref[...]
                      + x_ref[...].astype(jnp.float32)).astype(o_ref.dtype)


def mlp_block(x, ln_g, ln_b, w_fc, b_fc, w_proj, b_proj, *, tm_cap=256, tf_cap=1024):
    M, K = x.shape
    FF = w_fc.shape[1]
    tm = _tile(M, tm_cap, 8)
    tf = _tile(FF, tf_cap, 128)
    return pl.pallas_call(
        _mlp_kernel,
        out_shape=jax.ShapeDtypeStruct((M, K), jnp.bfloat16),
        grid=(M // tm, FF // tf),
        in_specs=[
            pl.BlockSpec((tm, K), lambda i, j: (i, 0)),   # x (also the residual)
            pl.BlockSpec((1, K), lambda i, j: (0, 0)),
            pl.BlockSpec((1, K), lambda i, j: (0, 0)),
            pl.BlockSpec((K, tf), lambda i, j: (0, j)),
            pl.BlockSpec((1, tf), lambda i, j: (0, j)),
            pl.BlockSpec((tf, K), lambda i, j: (j, 0)),
            pl.BlockSpec((1, K), lambda i, j: (0, 0)),
        ],
        out_specs=pl.BlockSpec((tm, K), lambda i, j: (i, 0)),
        scratch_shapes=[pltpu.VMEM((tm, K), jnp.float32),     # acc
                        pltpu.VMEM((tm, K), jnp.bfloat16)],   # LN(x) cache
        input_output_aliases={0: 0},                          # residual in place
        compiler_params=pltpu.CompilerParams(
            dimension_semantics=("parallel", "arbitrary"),
            vmem_limit_bytes=_vmem_limit_bytes()),
    )(x, ln_g.reshape(1, K), ln_b.reshape(1, K),
      w_fc, b_fc.reshape(1, FF), w_proj, b_proj.reshape(1, K))


# ------------------------------ attention ------------------------------------

def _attn_kernel(hpb, q_ref, k_ref, v_ref, mask_ref, o_ref):
    S = q_ref.shape[1]
    Dh = q_ref.shape[2] // hpb

    # causal AND key-padding validity, built once per (batch, head-group) step
    row = jax.lax.broadcasted_iota(jnp.int32, (S, S), 0)
    col = jax.lax.broadcasted_iota(jnp.int32, (S, S), 1)
    keyok = mask_ref[0] > 0.0                          # (1, S), broadcasts over rows
    allowed = (col <= row) & keyok                     # (S, S) bool, no f32 bias tensor

    for h in range(hpb):                               # static unrolled loop
        sl = pl.ds(h * Dh, Dh)
        qh = q_ref[0, :, sl]                           # bf16; 1/sqrt(Dh) pre-folded into W_q
        kh = k_ref[0, :, sl]
        vh = v_ref[0, :, sl]
        s = jax.lax.dot_general(qh, kh, (((1,), (1,)), ((), ())),
                                preferred_element_type=jnp.float32)
        s = jnp.where(allowed, s, -1e9)
        s = s - jnp.max(s, axis=-1, keepdims=True)
        p = jnp.exp(s)
        p = p * pl.reciprocal(jnp.sum(p, axis=-1, keepdims=True), approx=True)
        # write this head's result directly; only one head's (S,S) temps are live
        o_ref[0, :, sl] = jnp.dot(p.astype(jnp.bfloat16), vh,
                                  preferred_element_type=jnp.float32).astype(o_ref.dtype)


def attention(qkv, attn_mask_f32, B, S, n_head, d_head):
    # TODO(synk): add flash-style KV tiling (online softmax) for long S on v7x;
    # the non-flash form keeps (S,S) temporaries per head, fine for small S.
    H = n_head * d_head
    hpb = _heads_per_block(n_head, d_head)
    n_grp = n_head // hpb
    wcols = hpb * d_head

    qkv3 = qkv.reshape(B, S, 3 * H)                    # free reshape, no HBM transpose
    mask3 = attn_mask_f32.reshape(B, 1, S)

    out = pl.pallas_call(
        partial(_attn_kernel, hpb),
        out_shape=jax.ShapeDtypeStruct((B, S, H), jnp.bfloat16),
        grid=(B, n_grp),
        in_specs=[
            pl.BlockSpec((1, S, wcols), lambda b, g: (b, 0, g)),              # Q cols
            pl.BlockSpec((1, S, wcols), lambda b, g: (b, 0, n_grp + g)),      # K cols
            pl.BlockSpec((1, S, wcols), lambda b, g: (b, 0, 2 * n_grp + g)),  # V cols
            pl.BlockSpec((1, 1, S), lambda b, g: (b, 0, 0)),
        ],
        out_specs=pl.BlockSpec((1, S, wcols), lambda b, g: (b, 0, g)),
        compiler_params=pltpu.CompilerParams(
            dimension_semantics=("parallel", "parallel"),   # both shardable on v7x's 2 TCs
            vmem_limit_bytes=_vmem_limit_bytes()),
    )(qkv3, qkv3, qkv3, mask3)
    return out.reshape(B * S, H)                       # head-interleaved, no transpose


# ---------------------------- parameter setup ---------------------------------

def init_params(key, cfg):
    H, R = cfg['hidden'], cfg['rank']
    std = 0.02

    def nxt():
        nonlocal key
        key, sub = jax.random.split(key)
        return sub

    def lora(in_dim, out_dim):
        return {
            'A': jax.random.normal(nxt(), (in_dim, R), jnp.float32) * 0.01,
            # PyTorch module initializes B to zeros; small random values here so
            # the folded LoRA path is numerically exercised.
            'B': jax.random.normal(nxt(), (R, out_dim), jnp.float32) * 0.01,
        }

    def conv1d(in_dim, out_dim):
        return {
            'w': jax.random.normal(nxt(), (in_dim, out_dim), jnp.float32) * std,
            'b': jnp.zeros((out_dim,), jnp.float32),
        }

    params = {
        # resize_token_embeddings(vocab_size + 1) -> vocab+1 rows
        'wte': jax.random.normal(nxt(), (cfg['vocab'] + 1, H), jnp.float32) * std,
        'wpe': jax.random.normal(nxt(), (cfg['n_pos'], H), jnp.float32) * std,
        'ln_f_g': jnp.ones((H,), jnp.float32),
        'ln_f_b': jnp.zeros((H,), jnp.float32),
        # GPT2ForSequenceClassification.score: Linear(H, num_classes, bias=False)
        'score_w': jax.random.normal(nxt(), (H, cfg['num_classes']), jnp.float32) * std,
        'layers': [],
    }
    for _ in range(cfg['n_layer']):
        params['layers'].append({
            'ln1_g': jnp.ones((H,), jnp.float32), 'ln1_b': jnp.zeros((H,), jnp.float32),
            'ln2_g': jnp.ones((H,), jnp.float32), 'ln2_b': jnp.zeros((H,), jnp.float32),
            'c_attn': conv1d(H, 3 * H),   'c_attn_lora': lora(H, 3 * H),
            'c_proj': conv1d(H, H),       'c_proj_lora': lora(H, H),
            'c_fc': conv1d(H, 4 * H),     'c_fc_lora': lora(H, 4 * H),
            'c_mproj': conv1d(4 * H, H),  'c_mproj_lora': lora(4 * H, H),
        })
    return params


def fold_lora_params(params, cfg):
    """Fold LoRA into base weights once (W_eff = W + scaling * A @ B), fold
    1/sqrt(d_head) into the Q columns of c_attn, and cast matmul weights to bf16."""
    scaling = cfg['alpha'] / cfg['rank']
    H = cfg['hidden']
    inv_sqrt_dh = 1.0 / math.sqrt(H // cfg['n_head'])

    def fold(conv, lora, fold_q_scale=False):
        w_eff = conv['w'] + scaling * (lora['A'] @ lora['B'])
        b_eff = conv['b']
        if fold_q_scale:                     # attention softmax scale, zero runtime cost
            col_scale = jnp.concatenate(
                [jnp.full((H,), inv_sqrt_dh, jnp.float32),
                 jnp.ones((2 * H,), jnp.float32)], axis=0)
            w_eff = w_eff * col_scale[None, :]
            b_eff = b_eff * col_scale
        return {'w': w_eff.astype(jnp.bfloat16), 'b': b_eff.astype(jnp.float32)}

    folded = {
        'wte': params['wte'], 'wpe': params['wpe'],
        'ln_f_g': params['ln_f_g'], 'ln_f_b': params['ln_f_b'],
        'score_w': params['score_w'],
        'layers': [],
    }
    for lp in params['layers']:
        folded['layers'].append({
            'ln1_g': lp['ln1_g'], 'ln1_b': lp['ln1_b'],
            'ln2_g': lp['ln2_g'], 'ln2_b': lp['ln2_b'],
            'c_attn': fold(lp['c_attn'], lp['c_attn_lora'], fold_q_scale=True),
            'c_proj': fold(lp['c_proj'], lp['c_proj_lora']),
            'c_fc': fold(lp['c_fc'], lp['c_fc_lora']),
            'c_mproj': fold(lp['c_mproj'], lp['c_mproj_lora']),
        })
    return folded


# ------------------------------ forward pass ----------------------------------

def gpt2_emotion_classifier_forward(fparams, input_ids, attention_mask, cfg):
    B, S = input_ids.shape
    H, nH = cfg['hidden'], cfg['n_head']
    Dh = H // nH
    pad_id = cfg['pad_token_id']

    # token + position embeddings (gather = glue); residual stream kept in bf16
    h = fparams['wte'][input_ids] + fparams['wpe'][jnp.arange(S)][None, :, :]
    x = h.reshape(B * S, H).astype(jnp.bfloat16)
    mask_f32 = attention_mask.astype(jnp.float32)

    for lp in fparams['layers']:
        # --- attention block: (ln1 + c_attn) -> attention -> (c_proj + residual) ---
        qkv = ln_linear(x, lp['ln1_g'], lp['ln1_b'],
                        lp['c_attn']['w'], lp['c_attn']['b'])
        a = attention(qkv, mask_f32, B, S, nH, Dh)
        x = linear_residual(a, lp['c_proj']['w'], lp['c_proj']['b'], x)

        # --- MLP block fused: ln2 -> c_fc -> gelu -> c_proj -> +residual ---
        x = mlp_block(x, lp['ln2_g'], lp['ln2_b'],
                      lp['c_fc']['w'], lp['c_fc']['b'],
                      lp['c_mproj']['w'], lp['c_mproj']['b'])

    # HF GPT2ForSequenceClassification pooling: last non-pad token per example.
    seq_lengths = (jnp.argmax((input_ids == pad_id).astype(jnp.int32), axis=-1) - 1) % S
    xp = x.reshape(B, S, H)[jnp.arange(B), seq_lengths].astype(jnp.float32)   # (B, H)

    # Tiny ln_f + score head (B x H x C, ~KFLOPs): plain jnp, not worth a pallas_call.
    mu = jnp.mean(xp, axis=-1, keepdims=True)
    var = jnp.mean(jnp.square(xp - mu), axis=-1, keepdims=True)
    xn = (xp - mu) * jax.lax.rsqrt(var + 1e-5) * fparams['ln_f_g'] + fparams['ln_f_b']
    pooled_logits = xn @ fparams['score_w']
    # labels=None -> no loss; return classification logits
    # TODO(synk): optional cross-entropy loss when labels are provided is not modeled.
    return pooled_logits


# --------------------------------- main ---------------------------------------

if __name__ == "__main__":
    # Hardware-tile-friendly toy config: H=128 lanes, Dh=64, S multiple of 8.
    cfg = dict(vocab=64, n_pos=32, hidden=128, n_layer=2, n_head=2,
               num_classes=4, rank=16, alpha=16,
               pad_token_id=63)  # pad_token_id := eos_token_id (= vocab - 1)

    key = jax.random.PRNGKey(0)
    pkey, dkey = jax.random.split(key)
    params = init_params(pkey, cfg)
    fparams = fold_lora_params(params, cfg)

    B, S = 2, 16
    input_ids = jax.random.randint(dkey, (B, S), 0, cfg['vocab'] - 1)
    # pad the tail of the second example with pad_token_id
    input_ids = input_ids.at[1, 12:].set(cfg['pad_token_id'])
    attention_mask = jnp.ones((B, S), dtype=jnp.int32).at[1, 12:].set(0)

    fwd = jax.jit(lambda fp, ids, m: gpt2_emotion_classifier_forward(fp, ids, m, cfg))
    logits = fwd(fparams, input_ids, attention_mask)
    jax.block_until_ready(logits)

    assert logits.shape == (B, cfg['num_classes'])
    assert bool(jnp.all(jnp.isfinite(logits)))
    print("KERNEL_OK")
</pallas_src>

<mosaic_0001>
module attributes {stable_mosaic.version = 11 : i64} {
  func.func @_linear_residual_kernel(%arg0: i32, %arg1: memref<32x128xbf16, #tpu.memory_space<vmem>>, %arg2: memref<128x128xbf16, #tpu.memory_space<vmem>>, %arg3: memref<1x128xf32, #tpu.memory_space<vmem>>, %arg4: memref<32x128xbf16, #tpu.memory_space<vmem>>, %arg5: memref<32x128xbf16, #tpu.memory_space<vmem>>) attributes {dimension_semantics = [#tpu.dimension_semantics<parallel>], iteration_bounds = array<i64: 1>, scalar_prefetch = 0 : i64, scratch_operands = 0 : i64, tpu.core_type = #tpu.core_type<tc>, window_params = [{transform_indices = @transform_0, window_bounds = array<i64: 32, 128>}, {pipeline_mode = #tpu.pipeline_mode<synchronous>, transform_indices = @transform_1, window_bounds = array<i64: 128, 128>}, {pipeline_mode = #tpu.pipeline_mode<synchronous>, transform_indices = @transform_2, window_bounds = array<i64: 1, 128>}, {transform_indices = @transform_3, window_bounds = array<i64: 32, 128>}, {transform_indices = @transform_4, window_bounds = array<i64: 32, 128>}]} {
    %c0 = arith.constant 0 : index
    %c0_0 = arith.constant 0 : index
    %0 = vector.load %arg1[%c0, %c0_0] : memref<32x128xbf16, #tpu.memory_space<vmem>>, vector<32x128xbf16>
    %c0_1 = arith.constant 0 : index
    %c0_2 = arith.constant 0 : index
    %1 = vector.load %arg2[%c0_1, %c0_2] : memref<128x128xbf16, #tpu.memory_space<vmem>>, vector<128x128xbf16>
    %cst = arith.constant dense<0.000000e+00> : vector<32x128xf32>
    %2 = tpu.matmul %0, %1, %cst {dimension_numbers = #tpu.dot_dimension_numbers<[1], [0], [0], [1], [0, 0, 1, 1], [], []>} : vector<32x128xbf16>, vector<128x128xbf16>, vector<32x128xf32> -> vector<32x128xf32>
    %c0_3 = arith.constant 0 : index
    %c0_4 = arith.constant 0 : index
    %3 = vector.load %arg4[%c0_3, %c0_4] : memref<32x128xbf16, #tpu.memory_space<vmem>>, vector<32x128xbf16>
    %4 = arith.extf %3 : vector<32x128xbf16> to vector<32x128xf32>
    %5 = arith.addf %4, %2 : vector<32x128xf32>
    %c0_5 = arith.constant 0 : index
    %c0_6 = arith.constant 0 : index
    %6 = vector.load %arg3[%c0_5, %c0_6] : memref<1x128xf32, #tpu.memory_space<vmem>>, vector<1x128xf32>
    %7 = vector.broadcast %6 : vector<1x128xf32> to vector<32x128xf32>
    %8 = arith.addf %5, %7 : vector<32x128xf32>
    %9 = arith.truncf %8 : vector<32x128xf32> to vector<32x128xbf16>
    %c0_7 = arith.constant 0 : index
    %c0_8 = arith.constant 0 : index
    %10 = vector.load %arg5[%c0_7, %c0_8] : memref<32x128xbf16, #tpu.memory_space<vmem>>, vector<32x128xbf16>
    tpu.vector_store %arg5[%c0_7, %c0_8], %9 {strides = array<i32>} : memref<32x128xbf16, #tpu.memory_space<vmem>>, vector<32x128xbf16>,
    return
  }
  func.func @transform_0(%arg0: i32) -> (i32, i32) {
    %c0_i32 = arith.constant 0 : i32
    %c0_i32_0 = arith.constant 0 : i32
    return %arg0, %c0_i32 : i32, i32
  }
  func.func @transform_1(%arg0: i32) -> (i32, i32) {
    %c0_i32 = arith.constant 0 : i32
    %c0_i32_0 = arith.constant 0 : i32
    %c0_i32_1 = arith.constant 0 : i32
    return %c0_i32, %c0_i32_0 : i32, i32
  }
  func.func @transform_2(%arg0: i32) -> (i32, i32) {
    %c0_i32 = arith.constant 0 : i32
    %c0_i32_0 = arith.constant 0 : i32
    %c0_i32_1 = arith.constant 0 : i32
    return %c0_i32, %c0_i32_0 : i32, i32
  }
  func.func @transform_3(%arg0: i32) -> (i32, i32) {
    %c0_i32 = arith.constant 0 : i32
    %c0_i32_0 = arith.constant 0 : i32
    return %arg0, %c0_i32 : i32, i32
  }
  func.func @transform_4(%arg0: i32) -> (i32, i32) {
    %c0_i32 = arith.constant 0 : i32
    %c0_i32_0 = arith.constant 0 : i32
    return %arg0, %c0_i32 : i32, i32
  }
}

module attributes {stable_mosaic.version = 11 : i64} {
  func.func @_ln_linear_kernel(%arg0: i32, %arg1: memref<32x128xbf16, #tpu.memory_space<vmem>>, %arg2: memref<1x128xf32, #tpu.memory_space<vmem>>, %arg3: memref<1x128xf32, #tpu.memory_space<vmem>>, %arg4: memref<128x384xbf16, #tpu.memory_space<vmem>>, %arg5: memref<1x384xf32, #tpu.memory_space<vmem>>, %arg6: memref<32x384xbf16, #tpu.memory_space<vmem>>) attributes {dimension_semantics = [#tpu.dimension_semantics<parallel>], iteration_bounds = array<i64: 1>, scalar_prefetch = 0 : i64, scratch_operands = 0 : i64, tpu.core_type = #tpu.core_type<tc>, window_params = [{transform_indices = @transform_0, window_bounds = array<i64: 32, 128>}, {pipeline_mode = #tpu.pipeline_mode<synchronous>, transform_indices = @transform_1, window_bounds = array<i64: 1, 128>}, {pipeline_mode = #tpu.pipeline_mode<synchronous>, transform_indices = @transform_2, window_bounds = array<i64: 1, 128>}, {pipeline_mode = #tpu.pipeline_mode<synchronous>, transform_indices = @transform_3, window_bounds = array<i64: 128, 384>}, {pipeline_mode = #tpu.pipeline_mode<synchronous>, transform_indices = @transform_4, window_bounds = array<i64: 1, 384>}, {transform_indices = @transform_5, window_bounds = array<i64: 32, 384>}]} {
    %c0 = arith.constant 0 : index
    %c0_0 = arith.constant 0 : index
    %0 = vector.load %arg1[%c0, %c0_0] : memref<32x128xbf16, #tpu.memory_space<vmem>>, vector<32x128xbf16>
    %1 = arith.extf %0 : vector<32x128xbf16> to vector<32x128xf32>
    %cst = arith.constant dense<0.000000e+00> : vector<32xf32>
    %2 = vector.multi_reduction <add>, %1, %cst [1] : vector<32x128xf32> to vector<32xf32>
    %3 = vector.shape_cast %2 : vector<32xf32> to vector<32x1xf32>
    %cst_1 = arith.constant 1.280000e+02 : f32
    %4 = vector.broadcast %cst_1 : f32 to vector<32x1xf32>
    %5 = arith.divf %3, %4 : vector<32x1xf32>
    %6 = vector.broadcast %5 : vector<32x1xf32> to vector<32x128xf32>
    %7 = arith.subf %1, %6 : vector<32x128xf32>
    %8 = arith.mulf %7, %7 : vector<32x128xf32>
    %cst_2 = arith.constant dense<0.000000e+00> : vector<32xf32>
    %9 = vector.multi_reduction <add>, %8, %cst_2 [1] : vector<32x128xf32> to vector<32xf32>
    %10 = vector.shape_cast %9 : vector<32xf32> to vector<32x1xf32>
    %cst_3 = arith.constant 1.280000e+02 : f32
    %11 = vector.broadcast %cst_3 : f32 to vector<32x1xf32>
    %12 = arith.divf %10, %11 : vector<32x1xf32>
    %13 = vector.broadcast %5 : vector<32x1xf32> to vector<32x128xf32>
    %14 = arith.subf %1, %13 : vector<32x128xf32>
    %cst_4 = arith.constant 9.99999974E-6 : f32
    %15 = vector.broadcast %cst_4 : f32 to vector<32x1xf32>
    %16 = arith.addf %12, %15 : vector<32x1xf32>
    %17 = math.rsqrt %16 : vector<32x1xf32>
    %18 = vector.broadcast %17 : vector<32x1xf32> to vector<32x128xf32>
    %19 = arith.mulf %14, %18 : vector<32x128xf32>
    %c0_5 = arith.constant 0 : index
    %c0_6 = arith.constant 0 : index
    %20 = vector.load %arg2[%c0_5, %c0_6] : memref<1x128xf32, #tpu.memory_space<vmem>>, vector<1x128xf32>
    %21 = vector.broadcast %20 : vector<1x128xf32> to vector<32x128xf32>
    %22 = arith.mulf %19, %21 : vector<32x128xf32>
    %c0_7 = arith.constant 0 : index
    %c0_8 = arith.constant 0 : index
    %23 = vector.load %arg3[%c0_7, %c0_8] : memref<1x128xf32, #tpu.memory_space<vmem>>, vector<1x128xf32>
    %24 = vector.broadcast %23 : vector<1x128xf32> to vector<32x128xf32>
    %25 = arith.addf %22, %24 : vector<32x128xf32>
    %26 = arith.truncf %25 : vector<32x128xf32> to vector<32x128xbf16>
    %c0_9 = arith.constant 0 : index
    %c0_10 = arith.constant 0 : index
    %27 = vector.load %arg4[%c0_9, %c0_10] : memref<128x384xbf16, #tpu.memory_space<vmem>>, vector<128x384xbf16>
    %cst_11 = arith.constant dense<0.000000e+00> : vector<32x384xf32>
    %28 = tpu.matmul %26, %27, %cst_11 {dimension_numbers = #tpu.dot_dimension_numbers<[1], [0], [0], [1], [0, 0, 1, 1], [], []>} : vector<32x128xbf16>, vector<128x384xbf16>, vector<32x384xf32> -> vector<32x384xf32>
    %c0_12 = arith.constant 0 : index
    %c0_13 = arith.constant 0 : index
    %29 = vector.load %arg5[%c0_12, %c0_13] : memref<1x384xf32, #tpu.memory_space<vmem>>, vector<1x384xf32>
    %30 = vector.broadcast %29 : vector<1x384xf32> to vector<32x384xf32>
    %31 = arith.addf %28, %30 : vector<32x384xf32>
    %32 = arith.truncf %31 : vector<32x384xf32> to vector<32x384xbf16>
    %c0_14 = arith.constant 0 : index
    %c0_15 = arith.constant 0 : index
    %33 = vector.load %arg6[%c0_14, %c0_15] : memref<32x384xbf16, #tpu.memory_space<vmem>>, vector<32x384xbf16>
    tpu.vector_store %arg6[%c0_14, %c0_15], %32 {strides = array<i32>} : memref<32x384xbf16, #tpu.memory_space<vmem>>, vector<32x384xbf16>,
    return
  }
  func.func @transform_0(%arg0: i32) -> (i32, i32) {
    %c0_i32 = arith.constant 0 : i32
    %c0_i32_0 = arith.constant 0 : i32
    return %arg0, %c0_i32 : i32, i32
  }
  func.func @transform_1(%arg0: i32) -> (i32, i32) {
    %c0_i32 = arith.constant 0 : i32
    %c0_i32_0 = arith.constant 0 : i32
    %c0_i32_1 = arith.constant 0 : i32
    return %c0_i32, %c0_i32_0 : i32, i32
  }
  func.func @transform_2(%arg0: i32) -> (i32, i32) {
    %c0_i32 = arith.constant 0 : i32
    %c0_i32_0 = arith.constant 0 : i32
    %c0_i32_1 = arith.constant 0 : i32
    return %c0_i32, %c0_i32_0 : i32, i32
  }
  func.func @transform_3(%arg0: i32) -> (i32, i32) {
    %c0_i32 = arith.constant 0 : i32
    %c0_i32_0 = arith.constant 0 : i32
    %c0_i32_1 = arith.constant 0 : i32
    return %c0_i32, %c0_i32_0 : i32, i32
  }
  func.func @transform_4(%arg0: i32) -> (i32, i32) {
    %c0_i32 = arith.constant 0 : i32
    %c0_i32_0 = arith.constant 0 : i32
    %c0_i32_1 = arith.constant 0 : i32
    return %c0_i32, %c0_i32_0 : i32, i32
  }
  func.func @transform_5(%arg0: i32) -> (i32, i32) {
    %c0_i32 = arith.constant 0 : i32
    %c0_i32_0 = arith.constant 0 : i32
    return %arg0, %c0_i32 : i32, i32
  }
}

module attributes {stable_mosaic.version = 11 : i64} {
  func.func @_attn_kernel(%arg0: i32, %arg1: i32, %arg2: memref<1x16x128xbf16, #tpu.memory_space<vmem>>, %arg3: memref<1x16x128xbf16, #tpu.memory_space<vmem>>, %arg4: memref<1x16x128xbf16, #tpu.memory_space<vmem>>, %arg5: memref<1x1x16xf32, #tpu.memory_space<vmem>>, %arg6: memref<1x16x128xbf16, #tpu.memory_space<vmem>>) attributes {dimension_semantics = [#tpu.dimension_semantics<parallel>, #tpu.dimension_semantics<parallel>], iteration_bounds = array<i64: 2, 1>, scalar_prefetch = 0 : i64, scratch_operands = 0 : i64, tpu.core_type = #tpu.core_type<tc>, window_params = [{transform_indices = @transform_0, window_bounds = array<i64: 1, 16, 128>}, {transform_indices = @transform_1, window_bounds = array<i64: 1, 16, 128>}, {transform_indices = @transform_2, window_bounds = array<i64: 1, 16, 128>}, {transform_indices = @transform_3, window_bounds = array<i64: 1, 1, 16>}, {transform_indices = @transform_4, window_bounds = array<i64: 1, 16, 128>}]} {
    %0 = tpu.iota {dimensions = array<i32: 0>} : vector<16x16xi32>
    %1 = tpu.iota {dimensions = array<i32: 1>} : vector<16x16xi32>
    %c0 = arith.constant 0 : index
    %c0_0 = arith.constant 0 : index
    %c0_1 = arith.constant 0 : index
    %2 = vector.load %arg5[%c0, %c0_0, %c0_1] : memref<1x1x16xf32, #tpu.memory_space<vmem>>, vector<1x1x16xf32>
    %3 = vector.shape_cast %2 : vector<1x1x16xf32> to vector<1x16xf32>
    %cst = arith.constant 0.000000e+00 : f32
    %4 = vector.broadcast %cst : f32 to vector<1x16xf32>
    %5 = arith.cmpf ogt, %3, %4 : vector<1x16xf32>
    %6 = arith.cmpi sle, %1, %0 : vector<16x16xi32>
    %7 = vector.broadcast %5 : vector<1x16xi1> to vector<16x16xi1>
    %8 = arith.andi %6, %7 : vector<16x16xi1>
    %c0_2 = arith.constant 0 : index
    %c0_3 = arith.constant 0 : index
    %c0_4 = arith.constant 0 : index
    %9 = vector.load %arg2[%c0_2, %c0_3, %c0_4] : memref<1x16x128xbf16, #tpu.memory_space<vmem>>, vector<1x16x64xbf16>
    %10 = vector.shape_cast %9 : vector<1x16x64xbf16> to vector<16x64xbf16>
    %c0_5 = arith.constant 0 : index
    %c0_6 = arith.constant 0 : index
    %c0_7 = arith.constant 0 : index
    %11 = vector.load %arg3[%c0_5, %c0_6, %c0_7] : memref<1x16x128xbf16, #tpu.memory_space<vmem>>, vector<1x16x64xbf16>
    %12 = vector.shape_cast %11 : vector<1x16x64xbf16> to vector<16x64xbf16>
    %c0_8 = arith.constant 0 : index
    %c0_9 = arith.constant 0 : index
    %c0_10 = arith.constant 0 : index
    %13 = vector.load %arg4[%c0_8, %c0_9, %c0_10] : memref<1x16x128xbf16, #tpu.memory_space<vmem>>, vector<1x16x64xbf16>
    %14 = vector.shape_cast %13 : vector<1x16x64xbf16> to vector<16x64xbf16>
    %cst_11 = arith.constant dense<0.000000e+00> : vector<16x16xf32>
    %15 = tpu.matmul %10, %12, %cst_11 {dimension_numbers = #tpu.dot_dimension_numbers<[1], [1], [0], [0], [0, 0, 1, 0], [], []>} : vector<16x64xbf16>, vector<16x64xbf16>, vector<16x16xf32> -> vector<16x16xf32>
    %cst_12 = arith.constant -1.000000e+09 : f32
    %16 = vector.broadcast %cst_12 : f32 to vector<16x16xf32>
    %17 = arith.select %8, %15, %16 : vector<16x16xi1>, vector<16x16xf32>
    %cst_13 = arith.constant dense<0xFF800000> : vector<16xf32>
    %18 = vector.multi_reduction <maximumf>, %17, %cst_13 [1] : vector<16x16xf32> to vector<16xf32>
    %19 = vector.shape_cast %18 : vector<16xf32> to vector<16x1xf32>
    %20 = vector.broadcast %19 : vector<16x1xf32> to vector<16x16xf32>
    %21 = arith.subf %17, %20 : vector<16x16xf32>
    %22 = math.exp %21 : vector<16x16xf32>
    %cst_14 = arith.constant dense<0.000000e+00> : vector<16xf32>
    %23 = vector.multi_reduction <add>, %22, %cst_14 [1] : vector<16x16xf32> to vector<16xf32>
    %24 = vector.shape_cast %23 : vector<16xf32> to vector<16x1xf32>
    %25 = tpu.reciprocal %24 {approx = true} : vector<16x1xf32> -> vector<16x1xf32>
    %26 = vector.broadcast %25 : vector<16x1xf32> to vector<16x16xf32>
    %27 = arith.mulf %22, %26 : vector<16x16xf32>
    %28 = arith.truncf %27 : vector<16x16xf32> to vector<16x16xbf16>
    %cst_15 = arith.constant dense<0.000000e+00> : vector<16x64xf32>
    %29 = tpu.matmul %28, %14, %cst_15 {dimension_numbers = #tpu.dot_dimension_numbers<[1], [0], [0], [1], [0, 0, 1, 1], [], []>} : vector<16x16xbf16>, vector<16x64xbf16>, vector<16x64xf32> -> vector<16x64xf32>
    %30 = arith.truncf %29 : vector<16x64xf32> to vector<16x64xbf16>
    %c0_16 = arith.constant 0 : index
    %c0_17 = arith.constant 0 : index
    %c0_18 = arith.constant 0 : index
    %31 = vector.load %arg6[%c0_16, %c0_17, %c0_18] : memref<1x16x128xbf16, #tpu.memory_space<vmem>>, vector<1x16x64xbf16>
    %32 = vector.shape_cast %31 : vector<1x16x64xbf16> to vector<16x64xbf16>
    %33 = vector.shape_cast %30 : vector<16x64xbf16> to vector<1x16x64xbf16>
    tpu.vector_store %arg6[%c0_16, %c0_17, %c0_18], %33 {strides = array<i32>} : memref<1x16x128xbf16, #tpu.memory_space<vmem>>, vector<1x16x64xbf16>,
    %c0_19 = arith.constant 0 : index
    %c0_20 = arith.constant 0 : index
    %c64 = arith.constant 64 : index
    %34 = vector.load %arg2[%c0_19, %c0_20, %c64] : memref<1x16x128xbf16, #tpu.memory_space<vmem>>, vector<1x16x64xbf16>
    %35 = vector.shape_cast %34 : vector<1x16x64xbf16> to vector<16x64xbf16>
    %c0_21 = arith.constant 0 : index
    %c0_22 = arith.constant 0 : index
    %c64_23 = arith.constant 64 : index
    %36 = vector.load %arg3[%c0_21, %c0_22, %c64_23] : memref<1x16x128xbf16, #tpu.memory_space<vmem>>, vector<1x16x64xbf16>
    %37 = vector.shape_cast %36 : vector<1x16x64xbf16> to vector<16x64xbf16>
    %c0_24 = arith.constant 0 : index
    %c0_25 = arith.constant 0 : index
    %c64_26 = arith.constant 64 : index
    %38 = vector.load %arg4[%c0_24, %c0_25, %c64_26] : memref<1x16x128xbf16, #tpu.memory_space<vmem>>, vector<1x16x64xbf16>
    %39 = vector.shape_cast %38 : vector<1x16x64xbf16> to vector<16x64xbf16>
    %cst_27 = arith.constant dense<0.000000e+00> : vector<16x16xf32>
    %40 = tpu.matmul %35, %37, %cst_27 {dimension_numbers = #tpu.dot_dimension_numbers<[1], [1], [0], [0], [0, 0, 1, 0], [], []>} : vector<16x64xbf16>, vector<16x64xbf16>, vector<16x16xf32> -> vector<16x16xf32>
    %cst_28 = arith.constant -1.000000e+09 : f32
    %41 = vector.broadcast %cst_28 : f32 to vector<16x16xf32>
    %42 = arith.select %8, %40, %41 : vector<16x16xi1>, vector<16x16xf32>
    %cst_29 = arith.constant dense<0xFF800000> : vector<16xf32>
    %43 = vector.multi_reduction <maximumf>, %42, %cst_29 [1] : vector<16x16xf32> to vector<16xf32>
    %44 = vector.shape_cast %43 : vector<16xf32> to vector<16x1xf32>
    %45 = vector.broadcast %44 : vector<16x1xf32> to vector<16x16xf32>
    %46 = arith.subf %42, %45 : vector<16x16xf32>
    %47 = math.exp %46 : vector<16x16xf32>
    %cst_30 = arith.constant dense<0.000000e+00> : vector<16xf32>
    %48 = vector.multi_reduction <add>, %47, %cst_30 [1] : vector<16x16xf32> to vector<16xf32>
    %49 = vector.shape_cast %48 : vector<16xf32> to vector<16x1xf32>
    %50 = tpu.reciprocal %49 {approx = true} : vector<16x1xf32> -> vector<16x1xf32>
    %51 = vector.broadcast %50 : vector<16x1xf32> to vector<16x16xf32>
    %52 = arith.mulf %47, %51 : vector<16x16xf32>
    %53 = arith.truncf %52 : vector<16x16xf32> to vector<16x16xbf16>
    %cst_31 = arith.constant dense<0.000000e+00> : vector<16x64xf32>
    %54 = tpu.matmul %53, %39, %cst_31 {dimension_numbers = #tpu.dot_dimension_numbers<[1], [0], [0], [1], [0, 0, 1, 1], [], []>} : vector<16x16xbf16>, vector<16x64xbf16>, vector<16x64xf32> -> vector<16x64xf32>
    %55 = arith.truncf %54 : vector<16x64xf32> to vector<16x64xbf16>
    %c0_32 = arith.constant 0 : index
    %c0_33 = arith.constant 0 : index
    %c64_34 = arith.constant 64 : index
    %56 = vector.load %arg6[%c0_32, %c0_33, %c64_34] : memref<1x16x128xbf16, #tpu.memory_space<vmem>>, vector<1x16x64xbf16>
    %57 = vector.shape_cast %56 : vector<1x16x64xbf16> to vector<16x64xbf16>
    %58 = vector.shape_cast %55 : vector<16x64xbf16> to vector<1x16x64xbf16>
    tpu.vector_store %arg6[%c0_32, %c0_33, %c64_34], %58 {strides = array<i32>} : memref<1x16x128xbf16, #tpu.memory_space<vmem>>, vector<1x16x64xbf16>,
    return
  }
  func.func @transform_0(%arg0: i32, %arg1: i32) -> (i32, i32, i32) {
    %c0_i32 = arith.constant 0 : i32
    %c0_i32_0 = arith.constant 0 : i32
    return %arg0, %c0_i32, %arg1 : i32, i32, i32
  }
  func.func @transform_1(%arg0: i32, %arg1: i32) -> (i32, i32, i32) {
    %c1_i32 = arith.constant 1 : i32
    %0 = arith.addi %c1_i32, %arg1 : i32
    %c0_i32 = arith.constant 0 : i32
    %c0_i32_0 = arith.constant 0 : i32
    return %arg0, %c0_i32, %0 : i32, i32, i32
  }
  func.func @transform_2(%arg0: i32, %arg1: i32) -> (i32, i32, i32) {
    %c2_i32 = arith.constant 2 : i32
    %0 = arith.addi %c2_i32, %arg1 : i32
    %c0_i32 = arith.constant 0 : i32
    %c0_i32_0 = arith.constant 0 : i32
    return %arg0, %c0_i32, %0 : i32, i32, i32
  }
  func.func @transform_3(%arg0: i32, %arg1: i32) -> (i32, i32, i32) {
    %c0_i32 = arith.constant 0 : i32
    %c0_i32_0 = arith.constant 0 : i32
    %c0_i32_1 = arith.constant 0 : i32
    return %arg0, %c0_i32, %c0_i32_0 : i32, i32, i32
  }
  func.func @transform_4(%arg0: i32, %arg1: i32) -> (i32, i32, i32) {
    %c0_i32 = arith.constant 0 : i32
    %c0_i32_0 = arith.constant 0 : i32
    return %arg0, %c0_i32, %arg1 : i32, i32, i32
  }
}

module attributes {stable_mosaic.version = 11 : i64} {
  func.func @_mlp_kernel(%arg0: i32, %arg1: i32, %arg2: memref<32x128xbf16, #tpu.memory_space<vmem>>, %arg3: memref<1x128xf32, #tpu.memory_space<vmem>>, %arg4: memref<1x128xf32, #tpu.memory_space<vmem>>, %arg5: memref<128x512xbf16, #tpu.memory_space<vmem>>, %arg6: memref<1x512xf32, #tpu.memory_space<vmem>>, %arg7: memref<512x128xbf16, #tpu.memory_space<vmem>>, %arg8: memref<1x128xf32, #tpu.memory_space<vmem>>, %arg9: memref<32x128xbf16, #tpu.memory_space<vmem>>, %arg10: memref<32x128xf32, #tpu.memory_space<vmem>>, %arg11: memref<32x128xbf16, #tpu.memory_space<vmem>>) attributes {dimension_semantics = [#tpu.dimension_semantics<parallel>, #tpu.dimension_semantics<arbitrary>], iteration_bounds = array<i64: 1, 1>, scalar_prefetch = 0 : i64, scratch_operands = 2 : i64, tpu.core_type = #tpu.core_type<tc>, window_params = [{transform_indices = @transform_0, window_bounds = array<i64: 32, 128>}, {pipeline_mode = #tpu.pipeline_mode<synchronous>, transform_indices = @transform_1, window_bounds = array<i64: 1, 128>}, {pipeline_mode = #tpu.pipeline_mode<synchronous>, transform_indices = @transform_2, window_bounds = array<i64: 1, 128>}, {transform_indices = @transform_3, window_bounds = array<i64: 128, 512>}, {transform_indices = @transform_4, window_bounds = array<i64: 1, 512>}, {transform_indices = @transform_5, window_bounds = array<i64: 512, 128>}, {pipeline_mode = #tpu.pipeline_mode<synchronous>, transform_indices = @transform_6, window_bounds = array<i64: 1, 128>}, {transform_indices = @transform_7, window_bounds = array<i64: 32, 128>}]} {
    %c0_i32 = arith.constant 0 : i32
    %0 = arith.cmpi eq, %arg1, %c0_i32 : i32
    %1 = arith.extui %0 : i1 to i32
    %c0_i32_0 = arith.constant 0 : i32
    %2 = arith.cmpi ne, %1, %c0_i32_0 : i32
    scf.if %2 {
      %c0_19 = arith.constant 0 : index
      %c0_20 = arith.constant 0 : index
      %31 = vector.load %arg2[%c0_19, %c0_20] : memref<32x128xbf16, #tpu.memory_space<vmem>>, vector<32x128xbf16>
      %32 = arith.extf %31 : vector<32x128xbf16> to vector<32x128xf32>
      %cst_21 = arith.constant dense<0.000000e+00> : vector<32xf32>
      %33 = vector.multi_reduction <add>, %32, %cst_21 [1] : vector<32x128xf32> to vector<32xf32>
      %34 = vector.shape_cast %33 : vector<32xf32> to vector<32x1xf32>
      %cst_22 = arith.constant 1.280000e+02 : f32
      %35 = vector.broadcast %cst_22 : f32 to vector<32x1xf32>
      %36 = arith.divf %34, %35 : vector<32x1xf32>
      %37 = vector.broadcast %36 : vector<32x1xf32> to vector<32x128xf32>
      %38 = arith.subf %32, %37 : vector<32x128xf32>
      %39 = arith.mulf %38, %38 : vector<32x128xf32>
      %cst_23 = arith.constant dense<0.000000e+00> : vector<32xf32>
      %40 = vector.multi_reduction <add>, %39, %cst_23 [1] : vector<32x128xf32> to vector<32xf32>
      %41 = vector.shape_cast %40 : vector<32xf32> to vector<32x1xf32>
      %cst_24 = arith.constant 1.280000e+02 : f32
      %42 = vector.broadcast %cst_24 : f32 to vector<32x1xf32>
      %43 = arith.divf %41, %42 : vector<32x1xf32>
      %44 = vector.broadcast %36 : vector<32x1xf32> to vector<32x128xf32>
      %45 = arith.subf %32, %44 : vector<32x128xf32>
      %cst_25 = arith.constant 9.99999974E-6 : f32
      %46 = vector.broadcast %cst_25 : f32 to vector<32x1xf32>
      %47 = arith.addf %43, %46 : vector<32x1xf32>
      %48 = math.rsqrt %47 : vector<32x1xf32>
      %49 = vector.broadcast %48 : vector<32x1xf32> to vector<32x128xf32>
      %50 = arith.mulf %45, %49 : vector<32x128xf32>
      %c0_26 = arith.constant 0 : index
      %c0_27 = arith.constant 0 : index
      %51 = vector.load %arg3[%c0_26, %c0_27] : memref<1x128xf32, #tpu.memory_space<vmem>>, vector<1x128xf32>
      %52 = vector.broadcast %51 : vector<1x128xf32> to vector<32x128xf32>
      %53 = arith.mulf %50, %52 : vector<32x128xf32>
      %c0_28 = arith.constant 0 : index
      %c0_29 = arith.constant 0 : index
      %54 = vector.load %arg4[%c0_28, %c0_29] : memref<1x128xf32, #tpu.memory_space<vmem>>, vector<1x128xf32>
      %55 = vector.broadcast %54 : vector<1x128xf32> to vector<32x128xf32>
      %56 = arith.addf %53, %55 : vector<32x128xf32>
      %57 = arith.truncf %56 : vector<32x128xf32> to vector<32x128xbf16>
      %c0_30 = arith.constant 0 : index
      %c0_31 = arith.constant 0 : index
      %58 = vector.load %arg11[%c0_30, %c0_31] : memref<32x128xbf16, #tpu.memory_space<vmem>>, vector<32x128xbf16>
      tpu.vector_store %arg11[%c0_30, %c0_31], %57 {strides = array<i32>} : memref<32x128xbf16, #tpu.memory_space<vmem>>, vector<32x128xbf16>,
      %cst_32 = arith.constant 0.000000e+00 : f32
      %59 = vector.broadcast %cst_32 : f32 to vector<32x128xf32>
      %c0_33 = arith.constant 0 : index
      %c0_34 = arith.constant 0 : index
      %60 = vector.load %arg10[%c0_33, %c0_34] : memref<32x128xf32, #tpu.memory_space<vmem>>, vector<32x128xf32>
      tpu.vector_store %arg10[%c0_33, %c0_34], %59 {strides = array<i32>} : memref<32x128xf32, #tpu.memory_space<vmem>>, vector<32x128xf32>,
    } else {
    }
    %c0 = arith.constant 0 : index
    %c0_1 = arith.constant 0 : index
    %3 = vector.load %arg11[%c0, %c0_1] : memref<32x128xbf16, #tpu.memory_space<vmem>>, vector<32x128xbf16>
    %c0_2 = arith.constant 0 : index
    %c0_3 = arith.constant 0 : index
    %4 = vector.load %arg5[%c0_2, %c0_3] : memref<128x512xbf16, #tpu.memory_space<vmem>>, vector<128x512xbf16>
    %cst = arith.constant dense<0.000000e+00> : vector<32x512xf32>
    %5 = tpu.matmul %3, %4, %cst {dimension_numbers = #tpu.dot_dimension_numbers<[1], [0], [0], [1], [0, 0, 1, 1], [], []>} : vector<32x128xbf16>, vector<128x512xbf16>, vector<32x512xf32> -> vector<32x512xf32>
    %c0_4 = arith.constant 0 : index
    %c0_5 = arith.constant 0 : index
    %6 = vector.load %arg6[%c0_4, %c0_5] : memref<1x512xf32, #tpu.memory_space<vmem>>, vector<1x512xf32>
    %7 = vector.broadcast %6 : vector<1x512xf32> to vector<32x512xf32>
    %8 = arith.addf %5, %7 : vector<32x512xf32>
    %cst_6 = arith.constant 5.000000e-01 : f32
    %9 = vector.broadcast %cst_6 : f32 to vector<32x512xf32>
    %10 = arith.mulf %9, %8 : vector<32x512xf32>
    %cst_7 = arith.constant 4.471500e-02 : f32
    %11 = vector.broadcast %cst_7 : f32 to vector<32x512xf32>
    %12 = arith.mulf %11, %8 : vector<32x512xf32>
    %13 = arith.mulf %12, %8 : vector<32x512xf32>
    %14 = arith.mulf %13, %8 : vector<32x512xf32>
    %15 = arith.addf %8, %14 : vector<32x512xf32>
    %cst_8 = arith.constant 0.797884583 : f32
    %16 = vector.broadcast %cst_8 : f32 to vector<32x512xf32>
    %17 = arith.mulf %16, %15 : vector<32x512xf32>
    %18 = math.tanh %17 : vector<32x512xf32>
    %cst_9 = arith.constant 1.000000e+00 : f32
    %19 = vector.broadcast %cst_9 : f32 to vector<32x512xf32>
    %20 = arith.addf %19, %18 : vector<32x512xf32>
    %21 = arith.mulf %10, %20 : vector<32x512xf32>
    %c0_10 = arith.constant 0 : index
    %c0_11 = arith.constant 0 : index
    %22 = vector.load %arg10[%c0_10, %c0_11] : memref<32x128xf32, #tpu.memory_space<vmem>>, vector<32x128xf32>
    %23 = arith.truncf %21 : vector<32x512xf32> to vector<32x512xbf16>
    %c0_12 = arith.constant 0 : index
    %c0_13 = arith.constant 0 : index
    %24 = vector.load %arg7[%c0_12, %c0_13] : memref<512x128xbf16, #tpu.memory_space<vmem>>, vector<512x128xbf16>
    %cst_14 = arith.constant dense<0.000000e+00> : vector<32x128xf32>
    %25 = tpu.matmul %23, %24, %cst_14 {dimension_numbers = #tpu.dot_dimension_numbers<[1], [0], [0], [1], [0, 0, 1, 1], [], []>} : vector<32x512xbf16>, vector<512x128xbf16>, vector<32x128xf32> -> vector<32x128xf32>
    %26 = arith.addf %22, %25 : vector<32x128xf32>
    %c0_15 = arith.constant 0 : index
    %c0_16 = arith.constant 0 : index
    %27 = vector.load %arg10[%c0_15, %c0_16] : memref<32x128xf32, #tpu.memory_space<vmem>>, vector<32x128xf32>
    tpu.vector_store %arg10[%c0_15, %c0_16], %26 {strides = array<i32>} : memref<32x128xf32, #tpu.memory_space<vmem>>, vector<32x128xf32>,
    %c0_i32_17 = arith.constant 0 : i32
    %28 = arith.cmpi eq, %arg1, %c0_i32_17 : i32
    %29 = arith.extui %28 : i1 to i32
    %c0_i32_18 = arith.constant 0 : i32
    %30 = arith.cmpi ne, %29, %c0_i32_18 : i32
    scf.if %30 {
      %c0_19 = arith.constant 0 : index
      %c0_20 = arith.constant 0 : index
      %31 = vector.load %arg10[%c0_19, %c0_20] : memref<32x128xf32, #tpu.memory_space<vmem>>, vector<32x128xf32>
      %c0_21 = arith.constant 0 : index
      %c0_22 = arith.constant 0 : index
      %32 = vector.load %arg8[%c0_21, %c0_22] : memref<1x128xf32, #tpu.memory_space<vmem>>, vector<1x128xf32>
      %33 = vector.broadcast %32 : vector<1x128xf32> to vector<32x128xf32>
      %34 = arith.addf %31, %33 : vector<32x128xf32>
      %c0_23 = arith.constant 0 : index
      %c0_24 = arith.constant 0 : index
      %35 = vector.load %arg2[%c0_23, %c0_24] : memref<32x128xbf16, #tpu.memory_space<vmem>>, vector<32x128xbf16>
      %36 = arith.extf %35 : vector<32x128xbf16> to vector<32x128xf32>
      %37 = arith.addf %34, %36 : vector<32x128xf32>
      %38 = arith.truncf %37 : vector<32x128xf32> to vector<32x128xbf16>
      %c0_25 = arith.constant 0 : index
      %c0_26 = arith.constant 0 : index
      %39 = vector.load %arg9[%c0_25, %c0_26] : memref<32x128xbf16, #tpu.memory_space<vmem>>, vector<32x128xbf16>
      tpu.vector_store %arg9[%c0_25, %c0_26], %38 {strides = array<i32>} : memref<32x128xbf16, #tpu.memory_space<vmem>>, vector<32x128xbf16>,
    } else {
    }
    return
  }
  func.func @transform_0(%arg0: i32, %arg1: i32) -> (i32, i32) {
    %c0_i32 = arith.constant 0 : i32
    %c0_i32_0 = arith.constant 0 : i32
    return %arg0, %c0_i32 : i32, i32
  }
  func.func @transform_1(%arg0: i32, %arg1: i32) -> (i32, i32) {
    %c0_i32 = arith.constant 0 : i32
    %c0_i32_0 = arith.constant 0 : i32
    %c0_i32_1 = arith.constant 0 : i32
    return %c0_i32, %c0_i32_0 : i32, i32
  }
  func.func @transform_2(%arg0: i32, %arg1: i32) -> (i32, i32) {
    %c0_i32 = arith.constant 0 : i32
    %c0_i32_0 = arith.constant 0 : i32
    %c0_i32_1 = arith.constant 0 : i32
    return %c0_i32, %c0_i32_0 : i32, i32
  }
  func.func @transform_3(%arg0: i32, %arg1: i32) -> (i32, i32) {
    %c0_i32 = arith.constant 0 : i32
    %c0_i32_0 = arith.constant 0 : i32
    return %c0_i32, %arg1 : i32, i32
  }
  func.func @transform_4(%arg0: i32, %arg1: i32) -> (i32, i32) {
    %c0_i32 = arith.constant 0 : i32
    %c0_i32_0 = arith.constant 0 : i32
    return %c0_i32, %arg1 : i32, i32
  }
  func.func @transform_5(%arg0: i32, %arg1: i32) -> (i32, i32) {
    %c0_i32 = arith.constant 0 : i32
    %c0_i32_0 = arith.constant 0 : i32
    return %arg1, %c0_i32 : i32, i32
  }
  func.func @transform_6(%arg0: i32, %arg1: i32) -> (i32, i32) {
    %c0_i32 = arith.constant 0 : i32
    %c0_i32_0 = arith.constant 0 : i32
    %c0_i32_1 = arith.constant 0 : i32
    return %c0_i32, %c0_i32_0 : i32, i32
  }
  func.func @transform_7(%arg0: i32, %arg1: i32) -> (i32, i32) {
    %c0_i32 = arith.constant 0 : i32
    %c0_i32_0 = arith.constant 0 : i32
    return %arg0, %c0_i32 : i32, i32
  }
}

</mosaic_0001>

<llo_original>
// kernel: _lambda_.8
$region0: #{_lambda_.8}
  #allocation0 [shape = 'u32[]', space=smem, size = 0x4, offset = 0x4, fixed_abs, tag = 'smem constant byte address 0x4 - core index']
  #allocation1 [shape = 'u32[144,128]{1,0:T(1,128)}', space=vmem, size = 0x12000, scoped, tag = 'internal scratch']
  %s0 = inlined_call_operand.vmem [shape: bf16[32,128], index: 0, kind: input, shape index: {}]
  %s1 = inlined_call_operand.vmem [shape: f32[1,128], index: 1, kind: input, shape index: {}]
  %s2 = inlined_call_operand.vmem [shape: f32[1,128], index: 2, kind: input, shape index: {}]
  %s3 = inlined_call_operand.vmem [shape: bf16[128,384], index: 3, kind: input, shape index: {}]
  %s4 = inlined_call_operand.vmem [shape: f32[1,384], index: 4, kind: input, shape index: {}]
  %s5 = inlined_call_operand.vmem [shape: bf16[32,384], index: 5, kind: output, shape index: {}]
  %s6 = sld [smem:[#allocation0]]
  $region30: #{_lambda_.8} parent=0
    _
  %s8 = ssub.s32 1, %s6
  %s9 = scalar_select 0, %s8, %s6
  // Predicated region
  $region2: #{_lambda_.8} parent=0 // pred_check
    _
  $region3: #{_lambda_.8} parent=0 // pred_check_branch
    %11 = sbr.rel (0) target = $region5
  $region4: #{_lambda_.8} parent=0 // pred_region
    _
  $region5: #{_lambda_.8} parent=0 // pred_fallthru
    _
  // Predicated region
  $region6: #{_lambda_.8} parent=0 // pred_check
    _
  $region7: #{_lambda_.8} parent=0 // pred_check_branch
    %13 = sbr.rel (0) target = $region9
  $region8: #{_lambda_.8} parent=0 // pred_region
    _
  $region9: #{_lambda_.8} parent=0 // pred_fallthru
    _
  // Predicated region
  $region10: #{_lambda_.8} parent=0 // pred_check
    _
  $region11: #{_lambda_.8} parent=0 // pred_check_branch
    %15 = sbr.rel (0) target = $region13
  $region12: #{_lambda_.8} parent=0 // pred_region
    _
  $region13: #{_lambda_.8} parent=0 // pred_fallthru
    _
  // Predicated region
  $region14: #{_lambda_.8} parent=0 // pred_check
    _
  $region15: #{_lambda_.8} parent=0 // pred_check_branch
    %17 = sbr.rel (0) target = $region17
  $region16: #{_lambda_.8} parent=0 // pred_region
    _
  $region17: #{_lambda_.8} parent=0 // pred_fallthru
    _
  // Predicated region
  $region18: #{_lambda_.8} parent=0 // pred_check
    _
  $region19: #{_lambda_.8} parent=0 // pred_check_branch
    %19 = sbr.rel (0) target = $region21
  $region20: #{_lambda_.8} parent=0 // pred_region
    _
  $region21: #{_lambda_.8} parent=0 // pred_fallthru
    _
  %v21 = vld [vmem:[%s0] sm:$0xf]
  %v22 = vld [vmem:[%s0 + $0x4] sm:$0xf]
  %v23 = vld [vmem:[%s0 + $0x8] sm:$0xf]
  %v24 = vld [vmem:[%s0 + $0xc] sm:$0xf]
  %v25 = vunpack.c.l.bf16 %v21
  %v26 = vunpack.c.l.bf16 %v22
  %v27 = vunpack.c.l.bf16 %v23
  %v28 = vunpack.c.l.bf16 %v24
  %29 = vadd.xlane.f32.xlu0 %v25
  %v30 = vpop.xlane.xlu0 %29
  %31 = vadd.xlane.f32.xlu0 %v26
  %v32 = vpop.xlane.xlu0 %31
  %33 = vadd.xlane.f32.xlu0 %v27
  %v34 = vpop.xlane.xlu0 %33
  %35 = vadd.xlane.f32.xlu0 %v28
  %v36 = vpop.xlane.xlu0 %35
  %v37 = vrcp.pop 128.0
  %v38 = vmul.f32 %v30, %v37
  %v39 = vmul.f32 %v32, %v37
  %v40 = vmul.f32 %v34, %v37
  %v41 = vmul.f32 %v36, %v37
  %v42 = vsub.f32 %v25, %v38
  %v43 = vsub.f32 %v26, %v39
  %v44 = vsub.f32 %v27, %v40
  %v45 = vsub.f32 %v28, %v41
  %v46 = vmul.f32 %v42, %v42
  %v47 = vmul.f32 %v43, %v43
  %v48 = vmul.f32 %v44, %v44
  %v49 = vmul.f32 %v45, %v45
  %50 = vadd.xlane.f32.xlu0 %v46
  %v51 = vpop.xlane.xlu0 %50
  %52 = vadd.xlane.f32.xlu0 %v47
  %v53 = vpop.xlane.xlu0 %52
  %54 = vadd.xlane.f32.xlu0 %v48
  %v55 = vpop.xlane.xlu0 %54
  %56 = vadd.xlane.f32.xlu0 %v49
  %v57 = vpop.xlane.xlu0 %56
  %v58 = vmul.f32 %v51, %v37
  %v59 = vmul.f32 %v53, %v37
  %v60 = vmul.f32 %v55, %v37
  %v61 = vmul.f32 %v57, %v37
  %v62 = vadd.f32 %v58, 1e-05
  %v63 = vadd.f32 %v59, 1e-05
  %v64 = vadd.f32 %v60, 1e-05
  %v65 = vadd.f32 %v61, 1e-05
  %v66 = vrsqrt.pop %v62
  %v67 = vrsqrt.pop %v63
  %v68 = vrsqrt.pop %v64
  %v69 = vrsqrt.pop %v65
  %v70 = vmul.f32 %v42, %v66
  %v71 = vmul.f32 %v43, %v67
  %v72 = vmul.f32 %v44, %v68
  %v73 = vmul.f32 %v45, %v69
  %v74 = vld [vmem:[%s1] sm:$0x1]
  %v76 = vlaneseq
  %v77 = vshrl.u32 %v76, 7
  %v78 = vsub.s32 0, %v77
  %v79 = vrot.slane %v74, %v78
  %v81 = vmul.f32 %v70, %v79
  %v82 = vmul.f32 %v71, %v79
  %v83 = vmul.f32 %v72, %v79
  %v84 = vmul.f32 %v73, %v79
  %v85 = vld [vmem:[%s2] sm:$0x1]
  %v87 = vlaneseq
  %v88 = vshrl.u32 %v87, 7
  %v89 = vsub.s32 0, %v88
  %v90 = vrot.slane %v85, %v89
  %v92 = vadd.f32 %v81, %v90
  %v93 = vadd.f32 %v82, %v90
  %v94 = vadd.f32 %v83, %v90
  %v95 = vadd.f32 %v84, %v90
  %v96 = vpack.c.bf16 %v93, %v92
  %v97 = vpack.c.bf16 %v95, %v94
  %v98 = vld [vmem:[%s3] sm:$0xff]
  %v99 = vld [vmem:[%s3 + $0x8] sm:$0xf]
  %v100 = vld [vmem:[%s3 + $0xc] sm:$0xff]
  %v101 = vld [vmem:[%s3 + $0x14] sm:$0xf]
  %v102 = vld [vmem:[%s3 + $0x18] sm:$0xff]
  %v103 = vld [vmem:[%s3 + $0x20] sm:$0xf]
  %v104 = vld [vmem:[%s3 + $0x24] sm:$0xff]
  %v105 = vld [vmem:[%s3 + $0x2c] sm:$0xf]
  %v106 = vld [vmem:[%s3 + $0x30] sm:$0xff]
  %v107 = vld [vmem:[%s3 + $0x38] sm:$0xf]
  %v108 = vld [vmem:[%s3 + $0x3c] sm:$0xff]
  %v109 = vld [vmem:[%s3 + $0x44] sm:$0xf]
  %v110 = vld [vmem:[%s3 + $0x48] sm:$0xff]
  %v111 = vld [vmem:[%s3 + $0x50] sm:$0xf]
  %v112 = vld [vmem:[%s3 + $0x54] sm:$0xff]
  %v113 = vld [vmem:[%s3 + $0x5c] sm:$0xf]
  %v114 = vld [vmem:[%s3 + $0x60] sm:$0xff]
  %v115 = vld [vmem:[%s3 + $0x68] sm:$0xf]
  %v116 = vld [vmem:[%s3 + $0x6c] sm:$0xff]
  %v117 = vld [vmem:[%s3 + $0x74] sm:$0xf]
  %v118 = vld [vmem:[%s3 + $0x78] sm:$0xff]
  %v119 = vld [vmem:[%s3 + $0x80] sm:$0xf]
  %v120 = vld [vmem:[%s3 + $0x84] sm:$0xff]
  %v121 = vld [vmem:[%s3 + $0x8c] sm:$0xf]
  %v122 = vld [vmem:[%s3 + $0x90] sm:$0xff]
  %v123 = vld [vmem:[%s3 + $0x98] sm:$0xf]
  %v124 = vld [vmem:[%s3 + $0x9c] sm:$0xff]
  %v125 = vld [vmem:[%s3 + $0xa4] sm:$0xf]
  %v126 = vld [vmem:[%s3 + $0xa8] sm:$0xff]
  %v127 = vld [vmem:[%s3 + $0xb0] sm:$0xf]
  %v128 = vld [vmem:[%s3 + $0xb4] sm:$0xff]
  %v129 = vld [vmem:[%s3 + $0xbc] sm:$0xf]
  %v130 = vld [vmem:[%s4] sm:$0x7]
  %v132 = vlaneseq
  %v133 = vshrl.u32 %v132, 7
  %v134 = vsub.s32 0, %v133
  %v135 = vrot.slane %v130, %v134
  %v136 = vlaneseq
  %v137 = vshrl.u32 %v136, 7
  %v138 = vsub.s32 1, %v137
  %v139 = vrot.slane %v130, %v138
  %v140 = vlaneseq
  %v141 = vshrl.u32 %v140, 7
  %v142 = vsub.s32 2, %v141
  %v143 = vrot.slane %v130, %v142
  %v179 = vunpack.c.l.b16 %v98
  %v180 = vunpack.c.h.b16 %v98
  %v181 = vunpack.c.l.b16 %v99
  %v182 = vunpack.c.l.b16 %v100
  %v183 = vunpack.c.h.b16 %v100
  %v184 = vunpack.c.l.b16 %v101
  %v185 = vunpack.c.l.b16 %v102
  %v186 = vunpack.c.h.b16 %v102
  %v187 = vunpack.c.l.b16 %v103
  %v188 = vunpack.c.l.b16 %v104
  %v189 = vunpack.c.h.b16 %v104
  %v190 = vunpack.c.l.b16 %v105
  %v191 = vunpack.c.l.b16 %v106
  %v192 = vunpack.c.h.b16 %v106
  %v193 = vunpack.c.l.b16 %v107
  %v194 = vunpack.c.l.b16 %v108
  %v195 = vunpack.c.h.b16 %v108
  %v196 = vunpack.c.l.b16 %v109
  %v197 = vunpack.c.l.b16 %v110
  %v198 = vunpack.c.h.b16 %v110
  %v199 = vunpack.c.l.b16 %v111
  %v200 = vunpack.c.l.b16 %v112
  %v201 = vunpack.c.h.b16 %v112
  %v202 = vunpack.c.l.b16 %v113
  %v203 = vunpack.c.l.b16 %v114
  %v204 = vunpack.c.h.b16 %v114
  %v205 = vunpack.c.l.b16 %v115
  %v206 = vunpack.c.l.b16 %v116
  %v207 = vunpack.c.h.b16 %v116
  %v208 = vunpack.c.l.b16 %v117
  %v209 = vunpack.c.l.b16 %v118
  %v210 = vunpack.c.h.b16 %v118
  %v211 = vunpack.c.l.b16 %v119
  %v212 = vunpack.c.l.b16 %v120
  %v213 = vunpack.c.h.b16 %v120
  %v214 = vunpack.c.l.b16 %v121
  %v215 = vunpack.c.l.b16 %v122
  %v216 = vunpack.c.h.b16 %v122
  %v217 = vunpack.c.l.b16 %v123
  %v218 = vunpack.c.l.b16 %v124
  %v219 = vunpack.c.h.b16 %v124
  %v220 = vunpack.c.l.b16 %v125
  %v221 = vunpack.c.l.b16 %v126
  %v222 = vunpack.c.h.b16 %v126
  %v223 = vunpack.c.l.b16 %v127
  %v224 = vunpack.c.l.b16 %v128
  %v225 = vunpack.c.h.b16 %v128
  %v226 = vunpack.c.l.b16 %v129
  %v227 = vpack.c.b16 %v182, %v179
  %v228 = vpack.c.b16 %v183, %v180
  %v229 = vpack.c.b16 %v184, %v181
  %v230 = vpack.c.b16 %v188, %v185
  %v231 = vpack.c.b16 %v189, %v186
  %v232 = vpack.c.b16 %v190, %v187
  %v233 = vpack.c.b16 %v194, %v191
  %v234 = vpack.c.b16 %v195, %v192
  %v235 = vpack.c.b16 %v196, %v193
  %v236 = vpack.c.b16 %v200, %v197
  %v237 = vpack.c.b16 %v201, %v198
  %v238 = vpack.c.b16 %v202, %v199
  %v239 = vpack.c.b16 %v206, %v203
  %v240 = vpack.c.b16 %v207, %v204
  %v241 = vpack.c.b16 %v208, %v205
  %v242 = vpack.c.b16 %v212, %v209
  %v243 = vpack.c.b16 %v213, %v210
  %v244 = vpack.c.b16 %v214, %v211
  %v245 = vpack.c.b16 %v218, %v215
  %v246 = vpack.c.b16 %v219, %v216
  %v247 = vpack.c.b16 %v220, %v217
  %v248 = vpack.c.b16 %v224, %v221
  %v249 = vpack.c.b16 %v225, %v222
  %v250 = vpack.c.b16 %v226, %v223
  %275 = vmatprep.subr.bf16.mxu0 %v228
  %276 = vmatpush1.bf16.msra.mxu0 %v227
  %277 = vmatprep.subr.bf16.mxu0 %v231
  %278 = vmatpush1.bf16.msra.mxu0 %v230
  %279 = vmatprep.subr.bf16.mxu0 %v234
  %280 = vmatpush1.bf16.msra.mxu0 %v233
  %281 = vmatprep.subr.bf16.mxu0 %v237
  %282 = vmatpush1.bf16.msra.mxu0 %v236
  %283 = vmatprep.subr.bf16.mxu0 %v240
  %284 = vmatpush1.bf16.msra.mxu0 %v239
  %285 = vmatprep.subr.bf16.mxu0 %v243
  %286 = vmatpush1.bf16.msra.mxu0 %v242
  %287 = vmatprep.subr.bf16.mxu0 %v246
  %288 = vmatpush1.bf16.msra.mxu0 %v245
  %289 = vmatprep.subr.bf16.mxu0 %v249
  %290 = vmatpush1.bf16.msra.mxu0 %v248
  %291 = vmatprep.subr.bf16.mxu0 0
  %292 = vmatpush1.bf16.msra.mxu0 0
  %293 = vmatprep.subr.bf16.mxu0 0
  %294 = vmatpush1.bf16.msra.mxu0 0
  %295 = vmatprep.subr.bf16.mxu0 0
  %296 = vmatpush1.bf16.msra.mxu0 0
  %297 = vmatprep.subr.bf16.mxu0 0
  %298 = vmatpush1.bf16.msra.mxu0 0
  %299 = vmatprep.subr.bf16.mxu0 0
  %300 = vmatpush1.bf16.msra.mxu0 0
  %301 = vmatprep.subr.bf16.mxu0 0
  %302 = vmatpush1.bf16.msra.mxu0 0
  %303 = vmatprep.subr.bf16.mxu0 0
  %304 = vmatpush1.bf16.msra.mxu0 0
  %305 = vmatprep.subr.bf16.mxu0 0
  %306 = vmatpush1.bf16.msra.mxu0 0
  %307 = vmatprep.mubr.bf16.mxu0 0
  %308 = vmatmul.mubr.bf16.gmra.mrb[0].mxu0 %v96
  %v309 = vpop.f32.mrb[0].mxu0
  %v310 = vadd.f32 %v135, %v309
  %v311 = vpop.f32.mrb[0].mxu0
  %v312 = vadd.f32 %v139, %v311
  %v313 = vpop.f32.mrb[0].mxu0
  %v314 = vadd.f32 %v135, %v313
  %v315 = vpop.f32.mrb[0].mxu0
  %v316 = vadd.f32 %v139, %v315
  %317 = vmatprep.mubr.bf16.mxu0 0
  %318 = vmatmul.mubr.bf16.gmra.mrb[0].mxu0 %v97
  %v319 = vpop.f32.mrb[0].mxu0
  %v320 = vadd.f32 %v135, %v319
  %v321 = vpop.f32.mrb[0].mxu0
  %v322 = vadd.f32 %v139, %v321
  %v323 = vpop.f32.mrb[0].mxu0
  %v324 = vadd.f32 %v135, %v323
  %v325 = vpop.f32.mrb[0].mxu0
  %v326 = vadd.f32 %v139, %v325
  %327 = vdwg.mxu0
  %328 = vmatprep.subr.bf16.mxu0 0
  %329 = vmatpush1.bf16.msra.mxu0 %v229
  %330 = vmatprep.subr.bf16.mxu0 0
  %331 = vmatpush1.bf16.msra.mxu0 %v232
  %332 = vmatprep.subr.bf16.mxu0 0
  %333 = vmatpush1.bf16.msra.mxu0 %v235
  %334 = vmatprep.subr.bf16.mxu0 0
  %335 = vmatpush1.bf16.msra.mxu0 %v238
  %336 = vmatprep.subr.bf16.mxu0 0
  %337 = vmatpush1.bf16.msra.mxu0 %v241
  %338 = vmatprep.subr.bf16.mxu0 0
  %339 = vmatpush1.bf16.msra.mxu0 %v244
  %340 = vmatprep.subr.bf16.mxu0 0
  %341 = vmatpush1.bf16.msra.mxu0 %v247
  %342 = vmatprep.subr.bf16.mxu0 0
  %343 = vmatpush1.bf16.msra.mxu0 %v250
  %344 = vmatprep.subr.bf16.mxu0 0
  %345 = vmatpush1.bf16.msra.mxu0 0
  %346 = vmatprep.subr.bf16.mxu0 0
  %347 = vmatpush1.bf16.msra.mxu0 0
  %348 = vmatprep.subr.bf16.mxu0 0
  %349 = vmatpush1.bf16.msra.mxu0 0
  %350 = vmatprep.subr.bf16.mxu0 0
  %351 = vmatpush1.bf16.msra.mxu0 0
  %352 = vmatprep.subr.bf16.mxu0 0
  %353 = vmatpush1.bf16.msra.mxu0 0
  %354 = vmatprep.subr.bf16.mxu0 0
  %355 = vmatpush1.bf16.msra.mxu0 0
  %356 = vmatprep.subr.bf16.mxu0 0
  %357 = vmatpush1.bf16.msra.mxu0 0
  %358 = vmatprep.subr.bf16.mxu0 0
  %359 = vmatpush1.bf16.msra.mxu0 0
  %360 = vmatprep.mubr.bf16.mxu0 0
  %361 = vmatmul.mubr.bf16.gmra.mrb[0].mxu0 %v96
  %v362 = vpop.f32.mrb[0].mxu0
  %v363 = vadd.f32 %v143, %v362
  %v364 = vpop.f32.mrb[0].mxu0
  %v365 = vpop.f32.mrb[0].mxu0
  %v366 = vadd.f32 %v143, %v365
  %v367 = vpop.f32.mrb[0].mxu0
  %368 = vmatprep.mubr.bf16.mxu0 0
  %369 = vmatmul.mubr.bf16.gmra.mrb[0].mxu0 %v97
  %v370 = vpop.f32.mrb[0].mxu0
  %v371 = vadd.f32 %v143, %v370
  %v372 = vpop.f32.mrb[0].mxu0
  %v373 = vpop.f32.mrb[0].mxu0
  %v374 = vadd.f32 %v143, %v373
  %v375 = vpop.f32.mrb[0].mxu0
  %376 = vdwg.mxu0
  %v377 = vpack.c.bf16 %v314, %v310
  %v378 = vpack.c.bf16 %v316, %v312
  %v379 = vpack.c.bf16 %v366, %v363
  %v380 = vpack.c.bf16 %v324, %v320
  %v381 = vpack.c.bf16 %v326, %v322
  %v382 = vpack.c.bf16 %v374, %v371
  %v389 = vunpack.c.l.b16 %v377
  %v390 = vunpack.c.l.b16 %v378
  %v391 = vunpack.c.l.b16 %v379
  %v392 = vunpack.c.h.b16 %v377
  %v393 = vunpack.c.h.b16 %v378
  %v394 = vunpack.c.h.b16 %v379
  %v395 = vunpack.c.l.b16 %v380
  %v396 = vunpack.c.l.b16 %v381
  %v397 = vunpack.c.l.b16 %v382
  %v398 = vunpack.c.h.b16 %v380
  %v399 = vunpack.c.h.b16 %v381
  %v400 = vunpack.c.h.b16 %v382
  %v401 = vpack.c.b16 %v390, %v389
  %v402 = vpack.c.b16 %v391, %v391
  %v403 = vpack.c.b16 %v393, %v392
  %v404 = vpack.c.b16 %v394, %v394
  %v405 = vpack.c.b16 %v396, %v395
  %v406 = vpack.c.b16 %v397, %v397
  %v407 = vpack.c.b16 %v399, %v398
  %v408 = vpack.c.b16 %v400, %v400
  %417 = vst [vmem:[%s5] sm:$0xff] %v401
  %418 = vst [vmem:[%s5 + $0x8] sm:$0xf] %v402
  %419 = vst [vmem:[%s5 + $0xc] sm:$0xff] %v403
  %420 = vst [vmem:[%s5 + $0x14] sm:$0xf] %v404
  %421 = vst [vmem:[%s5 + $0x18] sm:$0xff] %v405
  %422 = vst [vmem:[%s5 + $0x20] sm:$0xf] %v406
  %423 = vst [vmem:[%s5 + $0x24] sm:$0xff] %v407
  %424 = vst [vmem:[%s5 + $0x2c] sm:$0xf] %v408
  // Predicated region
  $region22: #{_lambda_.8} parent=0 // pred_check
    _
  $region23: #{_lambda_.8} parent=0 // pred_check_branch
    %426 = sbr.rel (0) target = $region25
  $region24: #{_lambda_.8} parent=0 // pred_region
    _
  $region25: #{_lambda_.8} parent=0 // pred_fallthru
    _
  // Predicated region
  $region26: #{_lambda_.8} parent=0 // pred_check
    _
  $region27: #{_lambda_.8} parent=0 // pred_check_branch
    %428 = sbr.rel (0) target = $region29
  $region28: #{_lambda_.8} parent=0 // pred_region
    _
  $region29: #{_lambda_.8} parent=0 // pred_fallthru
    _

// kernel: _lambda_.9
$region0: #{_lambda_.9}
  #allocation0 [shape = 'u32[]', space=smem, size = 0x4, offset = 0x4, fixed_abs, tag = 'smem constant byte address 0x4 - core index']
  #allocation1 [shape = 'u32[144,128]{1,0:T(1,128)}', space=vmem, size = 0x12000, scoped, tag = 'internal scratch']
  %s0 = inlined_call_operand.vmem [shape: bf16[2,16,384], index: 0, kind: input, shape index: {}, may-alias: {0,1,2}]
  %s1 = inlined_call_operand.vmem [shape: bf16[2,16,384], index: 1, kind: input, shape index: {}, may-alias: {0,1,2}]
  %s2 = inlined_call_operand.vmem [shape: bf16[2,16,384], index: 2, kind: input, shape index: {}, may-alias: {0,1,2}]
  %s3 = inlined_call_operand.vmem [shape: f32[2,1,16], index: 3, kind: input, shape index: {}]
  %s4 = inlined_call_operand.vmem [shape: bf16[2,16,128], index: 4, kind: output, shape index: {}]
  %s5 = sld [smem:[#allocation0]]
  $region172: #{_lambda_.9} parent=0
    _
  %s7 = ssub.s32 1, %s5
  %s8 = scalar_select 0, %s7, %s5
  $region1: #{_lambda_.9} parent=0
    #allocation2 [shape = 'u8[8192]{0}', space=vmem, size = 0x2000, scoped, tag = 'input window, operand 0']
    #allocation3 [shape = 'u8[8192]{0}', space=vmem, size = 0x2000, scoped, tag = 'input window, operand 1']
    #allocation4 [shape = 'u8[8192]{0}', space=vmem, size = 0x2000, scoped, tag = 'input window, operand 2']
    loop: start=0, step=1, limit=4
    $region2: #{_lambda_.9} parent=1 // loop_pre_header
      _
    $region3: #{_lambda_.9} parent=1 // loop_header
      %s10 = sphi 0, %s14
      %p11 = scmp.ge.s32.totalorder %s10, 4
      %s17 = sphi 0, %s29
      %s18 = sphi 0, %s25
      %s19 = sphi 0, %s17
      %s20 = sphi 0, %s18
      %s21 = sphi 0, %s19
      %s22 = sphi 0, %s20
      %s34 = sphi 0, %s36
      %s37 = sphi 0, %s34
      %s38 = sphi 0, %s37
      %s54 = sphi 0, %s38
      %s64 = sphi 0, %s66
      %s67 = sphi 0, %s64
      %s68 = sphi 0, %s67
      %s84 = sphi 0, %s68
      %s94 = sphi 0, %s96
      %s97 = sphi 0, %s94
      %s98 = sphi 0, %s97
      %s114 = sphi 0, %s98
      %s120 = sphi 0, %s122
      %s123 = sphi 0, %s120
      %s124 = sphi 0, %s123
      %s140 = sphi 0, %s124
      %s148 = sphi 0, %s150
      %s151 = sphi 0, %s148
      %s152 = sphi 0, %s151
      %s168 = sphi 0, %s152
    $region4: #{_lambda_.9} parent=1 // loop_header_branch
      %13 = sbr.rel (%p11) target = $region8
    $region5: #{_lambda_.9} parent=1 // loop_body
      %s15 = ssub.s32 %s10, 1
      %s16 = ssub.s32 %s10, 2
      %s23 = sadd.s32 1, %s18
      %p24 = scmp.ge.s32.totalorder %s23, 1
      %s25 = scalar_select %p24, 0, %s23
      %s26 = sadd.s32 1, %s17
      %s27 = scalar_select %p24, %s26, %s17
      %p28 = scmp.ge.s32.totalorder %s27, 2
      %s29 = scalar_select %p28, 0, %s27
      %s30 = ssub.s32 %s17, %s29
      %s31 = ssub.s32 %s18, %s25
      %s32 = sor.u32 %s30, %s31
      %p33 = scmp.eq.s32.totalorder %s32, 0
      %s35 = sadd.s32 %s34, 1
      %s36 = scalar_select %p33, %s34, %s35
      %p39 = pneg %p33
      %p40 = scmp.eq.s32.totalorder %s10, 1
      %p41 = por %p39, %p40
      %p42 = scmp.ne.s32.totalorder %s34, %s37
      %p43 = scmp.eq.s32.totalorder %s10, 0
      %p44 = por %p42, %p43
      %p45 = scmp.ne.s32.totalorder %s34, %s37
      %p46 = scmp.eq.s32.totalorder %s15, 1
      %p47 = por %p45, %p46
      %p48 = scmp.ne.s32.totalorder %s37, %s38
      %p49 = scmp.eq.s32.totalorder %s15, 0
      %p50 = por %p48, %p49
      %p51 = scmp.ne.s32.totalorder %s37, %s38
      %p52 = scmp.eq.s32.totalorder %s16, 1
      %p53 = por %p51, %p52
      %p55 = scmp.ne.s32.totalorder %s38, %s54
      %p56 = scmp.eq.s32.totalorder %s16, 0
      %p57 = por %p55, %p56
      %s58 = sadd.s32 %s18, 1
      %s59 = sadd.s32 %s25, 1
      %s60 = ssub.s32 %s17, %s29
      %s61 = ssub.s32 %s58, %s59
      %s62 = sor.u32 %s60, %s61
      %p63 = scmp.eq.s32.totalorder %s62, 0
      %s65 = sadd.s32 %s64, 1
      %s66 = scalar_select %p63, %s64, %s65
      %p69 = pneg %p63
      %p70 = scmp.eq.s32.totalorder %s10, 1
      %p71 = por %p69, %p70
      %p72 = scmp.ne.s32.totalorder %s64, %s67
      %p73 = scmp.eq.s32.totalorder %s10, 0
      %p74 = por %p72, %p73
      %p75 = scmp.ne.s32.totalorder %s64, %s67
      %p76 = scmp.eq.s32.totalorder %s15, 1
      %p77 = por %p75, %p76
      %p78 = scmp.ne.s32.totalorder %s67, %s68
      %p79 = scmp.eq.s32.totalorder %s15, 0
      %p80 = por %p78, %p79
      %p81 = scmp.ne.s32.totalorder %s67, %s68
      %p82 = scmp.eq.s32.totalorder %s16, 1
      %p83 = por %p81, %p82
      %p85 = scmp.ne.s32.totalorder %s68, %s84
      %p86 = scmp.eq.s32.totalorder %s16, 0
      %p87 = por %p85, %p86
      %s88 = sadd.s32 %s18, 2
      %s89 = sadd.s32 %s25, 2
      %s90 = ssub.s32 %s17, %s29
      %s91 = ssub.s32 %s88, %s89
      %s92 = sor.u32 %s90, %s91
      %p93 = scmp.eq.s32.totalorder %s92, 0
      %s95 = sadd.s32 %s94, 1
      %s96 = scalar_select %p93, %s94, %s95
      %p99 = pneg %p93
      %p100 = scmp.eq.s32.totalorder %s10, 1
      %p101 = por %p99, %p100
      %p102 = scmp.ne.s32.totalorder %s94, %s97
      %p103 = scmp.eq.s32.totalorder %s10, 0
      %p104 = por %p102, %p103
      %p105 = scmp.ne.s32.totalorder %s94, %s97
      %p106 = scmp.eq.s32.totalorder %s15, 1
      %p107 = por %p105, %p106
      %p108 = scmp.ne.s32.totalorder %s97, %s98
      %p109 = scmp.eq.s32.totalorder %s15, 0
      %p110 = por %p108, %p109
      %p111 = scmp.ne.s32.totalorder %s97, %s98
      %p112 = scmp.eq.s32.totalorder %s16, 1
      %p113 = por %p111, %p112
      %p115 = scmp.ne.s32.totalorder %s98, %s114
      %p116 = scmp.eq.s32.totalorder %s16, 0
      %p117 = por %p115, %p116
      %s118 = ssub.s32 %s17, %s29
      %p119 = scmp.eq.s32.totalorder %s118, 0
      %s121 = sadd.s32 %s120, 1
      %s122 = scalar_select %p119, %s120, %s121
      %p125 = pneg %p119
      %p126 = scmp.eq.s32.totalorder %s10, 1
      %p127 = por %p125, %p126
      %p128 = scmp.ne.s32.totalorder %s120, %s123
      %p129 = scmp.eq.s32.totalorder %s10, 0
      %p130 = por %p128, %p129
      %p131 = scmp.ne.s32.totalorder %s120, %s123
      %p132 = scmp.eq.s32.totalorder %s15, 1
      %p133 = por %p131, %p132
      %p134 = scmp.ne.s32.totalorder %s123, %s124
      %p135 = scmp.eq.s32.totalorder %s15, 0
      %p136 = por %p134, %p135
      %p137 = scmp.ne.s32.totalorder %s123, %s124
      %p138 = scmp.eq.s32.totalorder %s16, 1
      %p139 = por %p137, %p138
      %p141 = scmp.ne.s32.totalorder %s124, %s140
      %p142 = scmp.eq.s32.totalorder %s16, 0
      %p143 = por %p141, %p142
      %s144 = ssub.s32 %s17, %s29
      %s145 = ssub.s32 %s18, %s25
      %s146 = sor.u32 %s144, %s145
      %p147 = scmp.eq.s32.totalorder %s146, 0
      %s149 = sadd.s32 %s148, 1
      %s150 = scalar_select %p147, %s148, %s149
      %p153 = pneg %p147
      %p154 = scmp.eq.s32.totalorder %s10, 1
      %p155 = por %p153, %p154
      %p156 = scmp.ne.s32.totalorder %s148, %s151
      %p157 = scmp.eq.s32.totalorder %s10, 0
      %p158 = por %p156, %p157
      %p159 = scmp.ne.s32.totalorder %s148, %s151
      %p160 = scmp.eq.s32.totalorder %s15, 1
      %p161 = por %p159, %p160
      %p162 = scmp.ne.s32.totalorder %s151, %s152
      %p163 = scmp.eq.s32.totalorder %s15, 0
      %p164 = por %p162, %p163
      %p165 = scmp.ne.s32.totalorder %s151, %s152
      %p166 = scmp.eq.s32.totalorder %s16, 1
      %p167 = por %p165, %p166
      %p169 = scmp.ne.s32.totalorder %s152, %s168
      %p170 = scmp.eq.s32.totalorder %s16, 0
      %p171 = por %p169, %p170
      %p172 = scmp.le.s32.totalorder 1, %s10
      %p173 = scmp.lt.s32.totalorder %s10, 3
      %p174 = pnand %p172, %p173
      %p175 = pneg %p174
      // Predicated region
      $region9: #{_lambda_.9} parent=5 // pred_check
        _
      $region10: #{_lambda_.9} parent=5 // pred_check_branch
        %177 = sbr.rel (%p174) target = $region12
      $region11: #{_lambda_.9} parent=5 // pred_region
        %s178 = ssub.s32 %s10, 1
      $region12: #{_lambda_.9} parent=5 // pred_fallthru
        _
      %p179 = scmp.lt.s32.totalorder %s10, 2
      // Predicated region
      $region13: #{_lambda_.9} parent=5 // pred_check
        %p180 = pneg %p179
      $region14: #{_lambda_.9} parent=5 // pred_check_branch
        %182 = sbr.rel (%p180) target = $region16
      $region15: #{_lambda_.9} parent=5 // pred_region
        // Predicated region
        $region17: #{_lambda_.9} parent=15 // pred_check
          %p183 = pneg %p44
        $region18: #{_lambda_.9} parent=15 // pred_check_branch
          %185 = sbr.rel (%p183) target = $region20
        $region19: #{_lambda_.9} parent=15 // pred_region
          %s186 = sand.u32 %s34, 1
          %s187 = sand.u32 %s34, 1
          %s188 = smul.addr %s187, 8
          %s189 = scalar_lea.vmem [#allocation2], %s188
          %s190 = smul.addr %s17, 6
          %s191 = sadd.s32 %s18, %s190
          %s192 = smul.addr %s191, 4
          %s193 = scalar_lea.vmem %s0, %s192
          // Predicated region
          $region21: #{_lambda_.9} parent=19 // pred_check
            _
          $region22: #{_lambda_.9} parent=19 // pred_check_branch
            %195 = sbr.rel (0) target = $region24
          $region23: #{_lambda_.9} parent=19 // pred_region
            // Predicated region
            $region25: #{_lambda_.9} parent=23 // pred_check
              _
            $region26: #{_lambda_.9} parent=23 // pred_check_branch
              %197 = sbr.rel target = $region28
            $region27: #{_lambda_.9} parent=23 // pred_region
              // Predicated region
              $region40: #{_lambda_.9} parent=27 // pred_check
                _
              $region41: #{_lambda_.9} parent=27 // pred_check_branch
                %214 = sbr.rel (0) target = $region43
              $region42: #{_lambda_.9} parent=27 // pred_region
                loop: start=0, step=1, limit=1
                $region44: #{_lambda_.9} parent=42 // loop_pre_header
                  _
                $region45: #{_lambda_.9} parent=42 // loop_header
                  %s216 = sphi 0, %s220
                  %p217 = scmp.ge.s32.totalorder %s216, 1
                  %s221 = sphi %s193, %s193
                  %s222 = sphi %s189, %s189
                $region46: #{_lambda_.9} parent=42 // loop_header_branch
                  %219 = sbr.rel (%p217) target = $region50
                $region47: #{_lambda_.9} parent=42 // loop_body
                  _
                $region48: #{_lambda_.9} parent=42 // loop_footer
                  %s220 = sadd.s32 1, %s216
                $region49: #{_lambda_.9} parent=42 // loop_footer_branch
                  %215 = sbr.rel target = $region45
                $region50: #{_lambda_.9} parent=42 // loop_exit
                  _
                loop: start=0, step=1, limit=1
                $region51: #{_lambda_.9} parent=42 // loop_pre_header
                  _
                $region52: #{_lambda_.9} parent=42 // loop_header
                  %s225 = sphi 0, %s229
                  %p226 = scmp.ge.s32.totalorder %s225, 1
                  %s230 = sphi %s193, %s193
                  %s231 = sphi %s189, %s189
                $region53: #{_lambda_.9} parent=42 // loop_header_branch
                  %228 = sbr.rel (%p226) target = $region57
                $region54: #{_lambda_.9} parent=42 // loop_body
                  %v232 = vld [vmem:[%s230] sm:$0xf]
                  %233 = vst [vmem:[%s231] sm:$0xf] %v232
                  %v234 = vld [vmem:[%s230 + $0xc] sm:$0xf]
                  %235 = vst [vmem:[%s231 + $0x4] sm:$0xf] %v234
                $region55: #{_lambda_.9} parent=42 // loop_footer
                  %s229 = sadd.s32 1, %s225
                $region56: #{_lambda_.9} parent=42 // loop_footer_branch
                  %224 = sbr.rel target = $region52
                $region57: #{_lambda_.9} parent=42 // loop_exit
                  _
              $region43: #{_lambda_.9} parent=27 // pred_fallthru
                _
            $region28: #{_lambda_.9} parent=23 // pred_fallthru
              _
            // Predicated region
            $region29: #{_lambda_.9} parent=23 // pred_check
              _
            $region30: #{_lambda_.9} parent=23 // pred_check_branch
              %199 = sbr.rel (0) target = $region32
            $region31: #{_lambda_.9} parent=23 // pred_region
              loop: start=0, step=1, limit=1
              $region33: #{_lambda_.9} parent=31 // loop_pre_header
                _
              $region34: #{_lambda_.9} parent=31 // loop_header
                %s202 = sphi 0, %s206
                %p203 = scmp.ge.s32.totalorder %s202, 1
                %s207 = sphi %s193, %s193
                %s208 = sphi %s189, %s189
              $region35: #{_lambda_.9} parent=31 // loop_header_branch
                %205 = sbr.rel (%p203) target = $region39
              $region36: #{_lambda_.9} parent=31 // loop_body
                %v209 = vld [vmem:[%s207] sm:$0xf]
                %210 = vst [vmem:[%s208] sm:$0xf] %v209
                %v211 = vld [vmem:[%s207 + $0xc] sm:$0xf]
                %212 = vst [vmem:[%s208 + $0x4] sm:$0xf] %v211
              $region37: #{_lambda_.9} parent=31 // loop_footer
                %s206 = sadd.s32 1, %s202
              $region38: #{_lambda_.9} parent=31 // loop_footer_branch
                %201 = sbr.rel target = $region34
              $region39: #{_lambda_.9} parent=31 // loop_exit
                _
            $region32: #{_lambda_.9} parent=23 // pred_fallthru
              _
          $region24: #{_lambda_.9} parent=19 // pred_fallthru
            _
          %236 = vnop
        $region20: #{_lambda_.9} parent=15 // pred_fallthru
          _
        // Predicated region
        $region58: #{_lambda_.9} parent=15 // pred_check
          %p237 = pneg %p74
        $region59: #{_lambda_.9} parent=15 // pred_check_branch
          %239 = sbr.rel (%p237) target = $region61
        $region60: #{_lambda_.9} parent=15 // pred_region
          %s240 = sand.u32 %s64, 1
          %s241 = sand.u32 %s64, 1
          %s242 = smul.addr %s241, 8
          %s243 = scalar_lea.vmem [#allocation3], %s242
          %s244 = sadd.s32 %s18, 1
          %s245 = smul.addr %s17, 6
          %s246 = sadd.s32 %s244, %s245
          %s247 = smul.addr %s246, 4
          %s248 = scalar_lea.vmem %s1, %s247
          // Predicated region
          $region62: #{_lambda_.9} parent=60 // pred_check
            _
          $region63: #{_lambda_.9} parent=60 // pred_check_branch
            %250 = sbr.rel (0) target = $region65
          $region64: #{_lambda_.9} parent=60 // pred_region
            // Predicated region
            $region66: #{_lambda_.9} parent=64 // pred_check
              _
            $region67: #{_lambda_.9} parent=64 // pred_check_branch
              %252 = sbr.rel target = $region69
            $region68: #{_lambda_.9} parent=64 // pred_region
              // Predicated region
              $region81: #{_lambda_.9} parent=68 // pred_check
                _
              $region82: #{_lambda_.9} parent=68 // pred_check_branch
                %269 = sbr.rel (0) target = $region84
              $region83: #{_lambda_.9} parent=68 // pred_region
                loop: start=0, step=1, limit=1
                $region85: #{_lambda_.9} parent=83 // loop_pre_header
                  _
                $region86: #{_lambda_.9} parent=83 // loop_header
                  %s271 = sphi 0, %s275
                  %p272 = scmp.ge.s32.totalorder %s271, 1
                  %s276 = sphi %s248, %s248
                  %s277 = sphi %s243, %s243
                $region87: #{_lambda_.9} parent=83 // loop_header_branch
                  %274 = sbr.rel (%p272) target = $region91
                $region88: #{_lambda_.9} parent=83 // loop_body
                  _
                $region89: #{_lambda_.9} parent=83 // loop_footer
                  %s275 = sadd.s32 1, %s271
                $region90: #{_lambda_.9} parent=83 // loop_footer_branch
                  %270 = sbr.rel target = $region86
                $region91: #{_lambda_.9} parent=83 // loop_exit
                  _
                loop: start=0, step=1, limit=1
                $region92: #{_lambda_.9} parent=83 // loop_pre_header
                  _
                $region93: #{_lambda_.9} parent=83 // loop_header
                  %s280 = sphi 0, %s284
                  %p281 = scmp.ge.s32.totalorder %s280, 1
                  %s285 = sphi %s248, %s248
                  %s286 = sphi %s243, %s243
                $region94: #{_lambda_.9} parent=83 // loop_header_branch
                  %283 = sbr.rel (%p281) target = $region98
                $region95: #{_lambda_.9} parent=83 // loop_body
                  %v287 = vld [vmem:[%s285] sm:$0xf]
                  %288 = vst [vmem:[%s286] sm:$0xf] %v287
                  %v289 = vld [vmem:[%s285 + $0xc] sm:$0xf]
                  %290 = vst [vmem:[%s286 + $0x4] sm:$0xf] %v289
                $region96: #{_lambda_.9} parent=83 // loop_footer
                  %s284 = sadd.s32 1, %s280
                $region97: #{_lambda_.9} parent=83 // loop_footer_branch
                  %279 = sbr.rel target = $region93
                $region98: #{_lambda_.9} parent=83 // loop_exit
                  _
              $region84: #{_lambda_.9} parent=68 // pred_fallthru
                _
            $region69: #{_lambda_.9} parent=64 // pred_fallthru
              _
            // Predicated region
            $region70: #{_lambda_.9} parent=64 // pred_check
              _
            $region71: #{_lambda_.9} parent=64 // pred_check_branch
              %254 = sbr.rel (0) target = $region73
            $region72: #{_lambda_.9} parent=64 // pred_region
              loop: start=0, step=1, limit=1
              $region74: #{_lambda_.9} parent=72 // loop_pre_header
                _
              $region75: #{_lambda_.9} parent=72 // loop_header
                %s257 = sphi 0, %s261
                %p258 = scmp.ge.s32.totalorder %s257, 1
                %s262 = sphi %s248, %s248
                %s263 = sphi %s243, %s243
              $region76: #{_lambda_.9} parent=72 // loop_header_branch
                %260 = sbr.rel (%p258) target = $region80
              $region77: #{_lambda_.9} parent=72 // loop_body
                %v264 = vld [vmem:[%s262] sm:$0xf]
                %265 = vst [vmem:[%s263] sm:$0xf] %v264
                %v266 = vld [vmem:[%s262 + $0xc] sm:$0xf]
                %267 = vst [vmem:[%s263 + $0x4] sm:$0xf] %v266
              $region78: #{_lambda_.9} parent=72 // loop_footer
                %s261 = sadd.s32 1, %s257
              $region79: #{_lambda_.9} parent=72 // loop_footer_branch
                %256 = sbr.rel target = $region75
              $region80: #{_lambda_.9} parent=72 // loop_exit
                _
            $region73: #{_lambda_.9} parent=64 // pred_fallthru
              _
          $region65: #{_lambda_.9} parent=60 // pred_fallthru
            _
          %291 = vnop
        $region61: #{_lambda_.9} parent=15 // pred_fallthru
          _
        // Predicated region
        $region99: #{_lambda_.9} parent=15 // pred_check
          %p292 = pneg %p104
        $region100: #{_lambda_.9} parent=15 // pred_check_branch
          %294 = sbr.rel (%p292) target = $region102
        $region101: #{_lambda_.9} parent=15 // pred_region
          %s295 = sand.u32 %s94, 1
          %s296 = sand.u32 %s94, 1
          %s297 = smul.addr %s296, 8
          %s298 = scalar_lea.vmem [#allocation4], %s297
          %s299 = sadd.s32 %s18, 2
          %s300 = smul.addr %s17, 6
          %s301 = sadd.s32 %s299, %s300
          %s302 = smul.addr %s301, 4
          %s303 = scalar_lea.vmem %s2, %s302
          // Predicated region
          $region103: #{_lambda_.9} parent=101 // pred_check
            _
          $region104: #{_lambda_.9} parent=101 // pred_check_branch
            %305 = sbr.rel (0) target = $region106
          $region105: #{_lambda_.9} parent=101 // pred_region
            // Predicated region
            $region107: #{_lambda_.9} parent=105 // pred_check
              _
            $region108: #{_lambda_.9} parent=105 // pred_check_branch
              %307 = sbr.rel target = $region110
            $region109: #{_lambda_.9} parent=105 // pred_region
              // Predicated region
              $region122: #{_lambda_.9} parent=109 // pred_check
                _
              $region123: #{_lambda_.9} parent=109 // pred_check_branch
                %324 = sbr.rel (0) target = $region125
              $region124: #{_lambda_.9} parent=109 // pred_region
                loop: start=0, step=1, limit=1
                $region126: #{_lambda_.9} parent=124 // loop_pre_header
                  _
                $region127: #{_lambda_.9} parent=124 // loop_header
                  %s326 = sphi 0, %s330
                  %p327 = scmp.ge.s32.totalorder %s326, 1
                  %s331 = sphi %s303, %s303
                  %s332 = sphi %s298, %s298
                $region128: #{_lambda_.9} parent=124 // loop_header_branch
                  %329 = sbr.rel (%p327) target = $region132
                $region129: #{_lambda_.9} parent=124 // loop_body
                  _
                $region130: #{_lambda_.9} parent=124 // loop_footer
                  %s330 = sadd.s32 1, %s326
                $region131: #{_lambda_.9} parent=124 // loop_footer_branch
                  %325 = sbr.rel target = $region127
                $region132: #{_lambda_.9} parent=124 // loop_exit
                  _
                loop: start=0, step=1, limit=1
                $region133: #{_lambda_.9} parent=124 // loop_pre_header
                  _
                $region134: #{_lambda_.9} parent=124 // loop_header
                  %s335 = sphi 0, %s339
                  %p336 = scmp.ge.s32.totalorder %s335, 1
                  %s340 = sphi %s303, %s303
                  %s341 = sphi %s298, %s298
                $region135: #{_lambda_.9} parent=124 // loop_header_branch
                  %338 = sbr.rel (%p336) target = $region139
                $region136: #{_lambda_.9} parent=124 // loop_body
                  %v342 = vld [vmem:[%s340] sm:$0xf]
                  %343 = vst [vmem:[%s341] sm:$0xf] %v342
                  %v344 = vld [vmem:[%s340 + $0xc] sm:$0xf]
                  %345 = vst [vmem:[%s341 + $0x4] sm:$0xf] %v344
                $region137: #{_lambda_.9} parent=124 // loop_footer
                  %s339 = sadd.s32 1, %s335
                $region138: #{_lambda_.9} parent=124 // loop_footer_branch
                  %334 = sbr.rel target = $region134
                $region139: #{_lambda_.9} parent=124 // loop_exit
                  _
              $region125: #{_lambda_.9} parent=109 // pred_fallthru
                _
            $region110: #{_lambda_.9} parent=105 // pred_fallthru
              _
            // Predicated region
            $region111: #{_lambda_.9} parent=105 // pred_check
              _
            $region112: #{_lambda_.9} parent=105 // pred_check_branch
              %309 = sbr.rel (0) target = $region114
            $region113: #{_lambda_.9} parent=105 // pred_region
              loop: start=0, step=1, limit=1
              $region115: #{_lambda_.9} parent=113 // loop_pre_header
                _
              $region116: #{_lambda_.9} parent=113 // loop_header
                %s312 = sphi 0, %s316
                %p313 = scmp.ge.s32.totalorder %s312, 1
                %s317 = sphi %s303, %s303
                %s318 = sphi %s298, %s298
              $region117: #{_lambda_.9} parent=113 // loop_header_branch
                %315 = sbr.rel (%p313) target = $region121
              $region118: #{_lambda_.9} parent=113 // loop_body
                %v319 = vld [vmem:[%s317] sm:$0xf]
                %320 = vst [vmem:[%s318] sm:$0xf] %v319
                %v321 = vld [vmem:[%s317 + $0xc] sm:$0xf]
                %322 = vst [vmem:[%s318 + $0x4] sm:$0xf] %v321
              $region119: #{_lambda_.9} parent=113 // loop_footer
                %s316 = sadd.s32 1, %s312
              $region120: #{_lambda_.9} parent=113 // loop_footer_branch
                %311 = sbr.rel target = $region116
              $region121: #{_lambda_.9} parent=113 // loop_exit
                _
            $region114: #{_lambda_.9} parent=105 // pred_fallthru
              _
          $region106: #{_lambda_.9} parent=101 // pred_fallthru
            _
          %346 = vnop
        $region102: #{_lambda_.9} parent=15 // pred_fallthru
          _
        // Predicated region
        $region140: #{_lambda_.9} parent=15 // pred_check
          %p347 = pneg %p130
        $region141: #{_lambda_.9} parent=15 // pred_check_branch
          %349 = sbr.rel (%p347) target = $region143
        $region142: #{_lambda_.9} parent=15 // pred_region
          %p350 = scmp.lt.s32.totalorder %s17, 1
          %s351 = scalar_select %p350, %s17, 1
          %s352 = scalar_lea.vmem %s3, %s351
        $region143: #{_lambda_.9} parent=15 // pred_fallthru
          _
      $region16: #{_lambda_.9} parent=5 // pred_fallthru
        _
      %p353 = scmp.le.s32.totalorder 1, %s10
      %p354 = scmp.lt.s32.totalorder %s10, 3
      %p355 = pnand %p353, %p354
      %p356 = pneg %p355
      // Predicated region
      $region144: #{_lambda_.9} parent=5 // pred_check
        _
      $region145: #{_lambda_.9} parent=5 // pred_check_branch
        %358 = sbr.rel (%p355) target = $region147
      $region146: #{_lambda_.9} parent=5 // pred_region
        %s359 = ssub.s32 %s10, 1
        %s360 = sand.u32 %s37, 1
        %s361 = sand.u32 %s37, 1
        %s362 = smul.addr %s361, 8
        %s363 = scalar_lea.vmem [#allocation2], %s362
        // Predicated region
        $region148: #{_lambda_.9} parent=146 // pred_check
          %p364 = pneg %p50
        $region149: #{_lambda_.9} parent=146 // pred_check_branch
          %366 = sbr.rel (%p364) target = $region151
        $region150: #{_lambda_.9} parent=146 // pred_region
          _
        $region151: #{_lambda_.9} parent=146 // pred_fallthru
          _
        %s367 = sand.u32 %s67, 1
        %s368 = sand.u32 %s67, 1
        %s369 = smul.addr %s368, 8
        %s370 = scalar_lea.vmem [#allocation3], %s369
        // Predicated region
        $region152: #{_lambda_.9} parent=146 // pred_check
          %p371 = pneg %p80
        $region153: #{_lambda_.9} parent=146 // pred_check_branch
          %373 = sbr.rel (%p371) target = $region155
        $region154: #{_lambda_.9} parent=146 // pred_region
          _
        $region155: #{_lambda_.9} parent=146 // pred_fallthru
          _
        %s374 = sand.u32 %s97, 1
        %s375 = sand.u32 %s97, 1
        %s376 = smul.addr %s375, 8
        %s377 = scalar_lea.vmem [#allocation4], %s376
        // Predicated region
        $region156: #{_lambda_.9} parent=146 // pred_check
          %p378 = pneg %p110
        $region157: #{_lambda_.9} parent=146 // pred_check_branch
          %380 = sbr.rel (%p378) target = $region159
        $region158: #{_lambda_.9} parent=146 // pred_region
          _
        $region159: #{_lambda_.9} parent=146 // pred_fallthru
          _
        %s381 = sand.u32 %s37, 1
        %s382 = sand.u32 %s37, 1
        %s383 = smul.addr %s382, 8
        %s384 = scalar_lea.vmem [#allocation2], %s383
        %p385 = pneg %p50
        %p386 = pneg %p47
        %s387 = sand.u32 %s67, 1
        %s388 = sand.u32 %s67, 1
        %s389 = smul.addr %s388, 8
        %s390 = scalar_lea.vmem [#allocation3], %s389
        %p391 = pneg %p80
        %p392 = pneg %p77
        %s393 = sand.u32 %s97, 1
        %s394 = sand.u32 %s97, 1
        %s395 = smul.addr %s394, 8
        %s396 = scalar_lea.vmem [#allocation4], %s395
        %p397 = pneg %p110
        %p398 = pneg %p107
        %p399 = scmp.lt.s32.totalorder %s19, 1
        %s400 = scalar_select %p399, %s19, 1
        %s401 = scalar_lea.vmem %s3, %s400
        %p402 = pneg %p136
        %p403 = pneg %p133
        %p404 = pneg %p164
        %p405 = pneg %p161
        %p406 = scmp.lt.s32.totalorder %s19, 1
        %s407 = scalar_select %p406, %s19, 1
        %p408 = scmp.lt.s32.totalorder %s20, 0
        %s409 = scalar_select %p408, %s20, 0
        %s410 = smul.addr %s407, 2
        %s411 = sadd.s32 %s409, %s410
        %s412 = smul.addr %s411, 4
        %s413 = scalar_lea.vmem %s4, %s412
        %s414 = sadd.s32 %s20, 1
        %s415 = sadd.s32 %s20, 2
        %p416 = scmp.lt.s32.totalorder %s19, 1
        %s417 = scalar_select %p416, %s19, 1
        %s418 = scalar_lea.vmem %s3, %s417
        %p419 = scmp.lt.s32.totalorder %s19, 1
        %s420 = scalar_select %p419, %s19, 1
        %p421 = scmp.lt.s32.totalorder %s20, 0
        %s422 = scalar_select %p421, %s20, 0
        %s423 = smul.addr %s420, 2
        %s424 = sadd.s32 %s422, %s423
        %s425 = smul.addr %s424, 4
        %s426 = scalar_lea.vmem %s4, %s425
        %v428 = vlaneseq
        %v429 = vshrl.u32 %v428, 7
        %v430 = vadd.s32 %v429, 8
        %v431 = vlaneseq
        %v432 = vand.u32 %v431, 127
        %v433 = vld [vmem:[%s418] sm:$0x1]
        %vm434 = vcmp.gt.f32.partialorder %v433, 0.0
        %vm435 = vcmp.le.s32.totalorder %v432, %v429
        %vm436 = vcmp.le.s32.totalorder %v432, %v430
        %v437 = vsel %vm434, 1, 0
        %v438 = vlaneseq
        %v439 = vshrl.u32 %v438, 7
        %v440 = vsub.s32 0, %v439
        %v441 = vrot.slane %v437, %v440
        %vm442 = vcmp.eq.s32.totalorder %v441, 1
        %vm443 = vmand %vm435, %vm442
        %vm444 = vmand %vm436, %vm442
        %v445 = vld [vmem:[%s363] sm:$0xf]
        %v446 = vld [vmem:[%s363 + $0x4] sm:$0xf]
        %v447 = vld [vmem:[%s370] sm:$0xf]
        %v448 = vld [vmem:[%s370 + $0x4] sm:$0xf]
        %v449 = vld [vmem:[%s377] sm:$0xf]
        %v450 = vld [vmem:[%s377 + $0x4] sm:$0xf]
        %v453 = vunpack.c.l.b16 %v445
        %v454 = vunpack.c.l.b16 %v446
        %v455 = vpack.c.b16 %v454, %v453
        %v458 = vunpack.c.l.b16 %v447
        %v459 = vunpack.c.l.b16 %v448
        %v460 = vpack.c.b16 %v459, %v458
        %vm461 = vcmask 523264
        %v463 = vsel %vm461, %v455, 0
        %v466 = vsel %vm461, %v460, 0
        %468 = vmatprep.subr.bf16.mxu0 0
        %469 = vmatpush1.bf16.xpose.msra.mxu0 %v466
        %470 = vmatprep.subr.bf16.mxu0 0
        %471 = vmatpush1.bf16.xpose.msra.mxu0 0
        %472 = vmatprep.subr.bf16.mxu0 0
        %473 = vmatpush1.bf16.xpose.msra.mxu0 0
        %474 = vmatprep.subr.bf16.mxu0 0
        %475 = vmatpush1.bf16.xpose.msra.mxu0 0
        %476 = vmatprep.subr.bf16.mxu0 0
        %477 = vmatpush1.bf16.xpose.msra.mxu0 0
        %478 = vmatprep.subr.bf16.mxu0 0
        %479 = vmatpush1.bf16.xpose.msra.mxu0 0
        %480 = vmatprep.subr.bf16.mxu0 0
        %481 = vmatpush1.bf16.xpose.msra.mxu0 0
        %482 = vmatprep.subr.bf16.mxu0 0
        %483 = vmatpush1.bf16.xpose.msra.mxu0 0
        %484 = vmatprep.subr.bf16.mxu0 0
        %485 = vmatpush1.bf16.xpose.msra.mxu0 0
        %486 = vmatprep.subr.bf16.mxu0 0
        %487 = vmatpush1.bf16.xpose.msra.mxu0 0
        %488 = vmatprep.subr.bf16.mxu0 0
        %489 = vmatpush1.bf16.xpose.msra.mxu0 0
        %490 = vmatprep.subr.bf16.mxu0 0
        %491 = vmatpush1.bf16.xpose.msra.mxu0 0
        %492 = vmatprep.subr.bf16.mxu0 0
        %493 = vmatpush1.bf16.xpose.msra.mxu0 0
        %494 = vmatprep.subr.bf16.mxu0 0
        %495 = vmatpush1.bf16.xpose.msra.mxu0 0
        %496 = vmatprep.subr.bf16.mxu0 0
        %497 = vmatpush1.bf16.xpose.msra.mxu0 0
        %498 = vmatprep.subr.bf16.mxu0 0
        %499 = vmatpush1.bf16.xpose.msra.mxu0 0
        %500 = vmatprep.mubr.bf16.mxu0 0
        %501 = vmatmul.mubr.bf16.gmra.mrb[0].mxu0 %v463
        %v502 = vpop.f32.mrb[0].mxu0
        %v503 = vadd.f32 0.0, %v502
        %v504 = vpop.f32.mrb[0].mxu0
        %v505 = vpop.f32.mrb[0].mxu0
        %v506 = vadd.f32 0.0, %v505
        %v507 = vpop.f32.mrb[0].mxu0
        %508 = vdwg.mxu0
        %v509 = vsel %vm443, %v503, -1e+09
        %v510 = vsel %vm444, %v506, -1e+09
        %vm511 = vcmask 130048
        %v512 = vsel %vm511, %v509, -inf
        %513 = vmax.xlane.f32.xlu0 %v512
        %v514 = vpop.xlane.xlu0 %513
        %v515 = vsel %vm511, %v510, -inf
        %516 = vmax.xlane.f32.xlu0 %v515
        %v517 = vpop.xlane.xlu0 %516
        %v518 = vsub.f32 %v509, %v514
        %v519 = vsub.f32 %v510, %v517
        %v520 = vmul.f32 %v518, 1.442695
        %v521 = vpow.pop %v520
        %v522 = vmul.f32 %v519, 1.442695
        %v523 = vpow.pop %v522
        %v524 = vsel %vm511, %v521, 0.0
        %525 = vadd.xlane.f32.xlu0 %v524
        %v526 = vpop.xlane.xlu0 %525
        %v527 = vsel %vm511, %v523, 0.0
        %528 = vadd.xlane.f32.xlu0 %v527
        %v529 = vpop.xlane.xlu0 %528
        %v530 = vrcp.pop %v526
        %v531 = vrcp.pop %v529
        %v532 = vmul.f32 %v521, %v530
        %v533 = vmul.f32 %v523, %v531
        %v534 = vpack.c.bf16 %v533, %v532
        %v537 = vunpack.c.l.b16 %v449
        %v538 = vunpack.c.l.b16 %v450
        %v539 = vpack.c.b16 %v538, %v537
        %v542 = vsel %vm511, %v534, 0
        %544 = vmatprep.subr.bf16.mxu0 0
        %545 = vmatpush1.bf16.msra.mxu0 %v539
        %546 = vmatprep.subr.bf16.mxu0 0
        %547 = vmatpush1.bf16.msra.mxu0 0
        %548 = vmatprep.subr.bf16.mxu0 0
        %549 = vmatpush1.bf16.msra.mxu0 0
        %550 = vmatprep.subr.bf16.mxu0 0
        %551 = vmatpush1.bf16.msra.mxu0 0
        %552 = vmatprep.subr.bf16.mxu0 0
        %553 = vmatpush1.bf16.msra.mxu0 0
        %554 = vmatprep.subr.bf16.mxu0 0
        %555 = vmatpush1.bf16.msra.mxu0 0
        %556 = vmatprep.subr.bf16.mxu0 0
        %557 = vmatpush1.bf16.msra.mxu0 0
        %558 = vmatprep.subr.bf16.mxu0 0
        %559 = vmatpush1.bf16.msra.mxu0 0
        %560 = vmatprep.subr.bf16.mxu0 0
        %561 = vmatpush1.bf16.msra.mxu0 0
        %562 = vmatprep.subr.bf16.mxu0 0
        %563 = vmatpush1.bf16.msra.mxu0 0
        %564 = vmatprep.subr.bf16.mxu0 0
        %565 = vmatpush1.bf16.msra.mxu0 0
        %566 = vmatprep.subr.bf16.mxu0 0
        %567 = vmatpush1.bf16.msra.mxu0 0
        %568 = vmatprep.subr.bf16.mxu0 0
        %569 = vmatpush1.bf16.msra.mxu0 0
        %570 = vmatprep.subr.bf16.mxu0 0
        %571 = vmatpush1.bf16.msra.mxu0 0
        %572 = vmatprep.subr.bf16.mxu0 0
        %573 = vmatpush1.bf16.msra.mxu0 0
        %574 = vmatprep.subr.bf16.mxu0 0
        %575 = vmatpush1.bf16.msra.mxu0 0
        %576 = vmatprep.mubr.bf16.mxu0 0
        %577 = vmatmul.mubr.bf16.gmra.mrb[0].mxu0 %v542
        %v578 = vpop.f32.mrb[0].mxu0
        %v579 = vadd.f32 0.0, %v578
        %v580 = vpop.f32.mrb[0].mxu0
        %v581 = vpop.f32.mrb[0].mxu0
        %v582 = vadd.f32 0.0, %v581
        %v583 = vpop.f32.mrb[0].mxu0
        %584 = vdwg.mxu0
        %v585 = vpack.c.bf16 %v582, %v579
        %v587 = vunpack.c.l.b16 %v585
        %v588 = vunpack.c.h.b16 %v585
        %v589 = vpack.c.b16 %v587, %v587
        %v590 = vpack.c.b16 %v588, %v588
        %vm593 = vcmask 519168
        %594 = vst.msk [vmem:[%s426] sm:$0xf] %vm593, %v589
        %595 = vst.msk [vmem:[%s426 + $0x4] sm:$0xf] %vm593, %v590
        %v596 = vld [vmem:[%s363] sm:$0xf]
        %v597 = vld [vmem:[%s363 + $0x4] sm:$0xf]
        %v598 = vld [vmem:[%s370] sm:$0xf]
        %v599 = vld [vmem:[%s370 + $0x4] sm:$0xf]
        %v600 = vld [vmem:[%s377] sm:$0xf]
        %v601 = vld [vmem:[%s377 + $0x4] sm:$0xf]
        %v604 = vunpack.c.l.b16 %v596
        %v605 = vunpack.c.l.b16 %v597
        %v606 = vpack.c.b16 %v605, %v604
        %607 = vrot.lane.b32.xlu0 %v606, 64
        %v608 = vpop.permute.xlu0 %607
        %v611 = vunpack.c.l.b16 %v598
        %v612 = vunpack.c.l.b16 %v599
        %v613 = vpack.c.b16 %v612, %v611
        %614 = vrot.lane.b32.xlu0 %v613, 64
        %v615 = vpop.permute.xlu0 %614
        %v617 = vsel %vm461, %v608, 0
        %v620 = vsel %vm461, %v615, 0
        %622 = vmatprep.subr.bf16.mxu0 0
        %623 = vmatpush1.bf16.xpose.msra.mxu0 %v620
        %624 = vmatprep.subr.bf16.mxu0 0
        %625 = vmatpush1.bf16.xpose.msra.mxu0 0
        %626 = vmatprep.subr.bf16.mxu0 0
        %627 = vmatpush1.bf16.xpose.msra.mxu0 0
        %628 = vmatprep.subr.bf16.mxu0 0
        %629 = vmatpush1.bf16.xpose.msra.mxu0 0
        %630 = vmatprep.subr.bf16.mxu0 0
        %631 = vmatpush1.bf16.xpose.msra.mxu0 0
        %632 = vmatprep.subr.bf16.mxu0 0
        %633 = vmatpush1.bf16.xpose.msra.mxu0 0
        %634 = vmatprep.subr.bf16.mxu0 0
        %635 = vmatpush1.bf16.xpose.msra.mxu0 0
        %636 = vmatprep.subr.bf16.mxu0 0
        %637 = vmatpush1.bf16.xpose.msra.mxu0 0
        %638 = vmatprep.subr.bf16.mxu0 0
        %639 = vmatpush1.bf16.xpose.msra.mxu0 0
        %640 = vmatprep.subr.bf16.mxu0 0
        %641 = vmatpush1.bf16.xpose.msra.mxu0 0
        %642 = vmatprep.subr.bf16.mxu0 0
        %643 = vmatpush1.bf16.xpose.msra.mxu0 0
        %644 = vmatprep.subr.bf16.mxu0 0
        %645 = vmatpush1.bf16.xpose.msra.mxu0 0
        %646 = vmatprep.subr.bf16.mxu0 0
        %647 = vmatpush1.bf16.xpose.msra.mxu0 0
        %648 = vmatprep.subr.bf16.mxu0 0
        %649 = vmatpush1.bf16.xpose.msra.mxu0 0
        %650 = vmatprep.subr.bf16.mxu0 0
        %651 = vmatpush1.bf16.xpose.msra.mxu0 0
        %652 = vmatprep.subr.bf16.mxu0 0
        %653 = vmatpush1.bf16.xpose.msra.mxu0 0
        %654 = vmatprep.mubr.bf16.mxu0 0
        %655 = vmatmul.mubr.bf16.gmra.mrb[0].mxu0 %v617
        %v656 = vpop.f32.mrb[0].mxu0
        %v657 = vadd.f32 0.0, %v656
        %v658 = vpop.f32.mrb[0].mxu0
        %v659 = vpop.f32.mrb[0].mxu0
        %v660 = vadd.f32 0.0, %v659
        %v661 = vpop.f32.mrb[0].mxu0
        %662 = vdwg.mxu0
        %v663 = vsel %vm443, %v657, -1e+09
        %v664 = vsel %vm444, %v660, -1e+09
        %v665 = vsel %vm511, %v663, -inf
        %666 = vmax.xlane.f32.xlu0 %v665
        %v667 = vpop.xlane.xlu0 %666
        %v668 = vsel %vm511, %v664, -inf
        %669 = vmax.xlane.f32.xlu0 %v668
        %v670 = vpop.xlane.xlu0 %669
        %v671 = vsub.f32 %v663, %v667
        %v672 = vsub.f32 %v664, %v670
        %v673 = vmul.f32 %v671, 1.442695
        %v674 = vpow.pop %v673
        %v675 = vmul.f32 %v672, 1.442695
        %v676 = vpow.pop %v675
        %v677 = vsel %vm511, %v674, 0.0
        %678 = vadd.xlane.f32.xlu0 %v677
        %v679 = vpop.xlane.xlu0 %678
        %v680 = vsel %vm511, %v676, 0.0
        %681 = vadd.xlane.f32.xlu0 %v680
        %v682 = vpop.xlane.xlu0 %681
        %v683 = vrcp.pop %v679
        %v684 = vrcp.pop %v682
        %v685 = vmul.f32 %v674, %v683
        %v686 = vmul.f32 %v676, %v684
        %v687 = vpack.c.bf16 %v686, %v685
        %v690 = vunpack.c.l.b16 %v600
        %v691 = vunpack.c.l.b16 %v601
        %v692 = vpack.c.b16 %v691, %v690
        %693 = vrot.lane.b32.xlu0 %v692, 64
        %v694 = vpop.permute.xlu0 %693
        %v697 = vsel %vm511, %v687, 0
        %699 = vmatprep.subr.bf16.mxu0 0
        %700 = vmatpush1.bf16.msra.mxu0 %v694
        %701 = vmatprep.subr.bf16.mxu0 0
        %702 = vmatpush1.bf16.msra.mxu0 0
        %703 = vmatprep.subr.bf16.mxu0 0
        %704 = vmatpush1.bf16.msra.mxu0 0
        %705 = vmatprep.subr.bf16.mxu0 0
        %706 = vmatpush1.bf16.msra.mxu0 0
        %707 = vmatprep.subr.bf16.mxu0 0
        %708 = vmatpush1.bf16.msra.mxu0 0
        %709 = vmatprep.subr.bf16.mxu0 0
        %710 = vmatpush1.bf16.msra.mxu0 0
        %711 = vmatprep.subr.bf16.mxu0 0
        %712 = vmatpush1.bf16.msra.mxu0 0
        %713 = vmatprep.subr.bf16.mxu0 0
        %714 = vmatpush1.bf16.msra.mxu0 0
        %715 = vmatprep.subr.bf16.mxu0 0
        %716 = vmatpush1.bf16.msra.mxu0 0
        %717 = vmatprep.subr.bf16.mxu0 0
        %718 = vmatpush1.bf16.msra.mxu0 0
        %719 = vmatprep.subr.bf16.mxu0 0
        %720 = vmatpush1.bf16.msra.mxu0 0
        %721 = vmatprep.subr.bf16.mxu0 0
        %722 = vmatpush1.bf16.msra.mxu0 0
        %723 = vmatprep.subr.bf16.mxu0 0
        %724 = vmatpush1.bf16.msra.mxu0 0
        %725 = vmatprep.subr.bf16.mxu0 0
        %726 = vmatpush1.bf16.msra.mxu0 0
        %727 = vmatprep.subr.bf16.mxu0 0
        %728 = vmatpush1.bf16.msra.mxu0 0
        %729 = vmatprep.subr.bf16.mxu0 0
        %730 = vmatpush1.bf16.msra.mxu0 0
        %731 = vmatprep.mubr.bf16.mxu0 0
        %732 = vmatmul.mubr.bf16.gmra.mrb[0].mxu0 %v697
        %v733 = vpop.f32.mrb[0].mxu0
        %v734 = vadd.f32 0.0, %v733
        %v735 = vpop.f32.mrb[0].mxu0
        %v736 = vpop.f32.mrb[0].mxu0
        %v737 = vadd.f32 0.0, %v736
        %v738 = vpop.f32.mrb[0].mxu0
        %739 = vdwg.mxu0
        %v740 = vpack.c.bf16 %v737, %v734
        %v742 = vunpack.c.l.b16 %v740
        %v743 = vunpack.c.h.b16 %v740
        %v744 = vpack.c.b16 %v742, %v742
        %v745 = vpack.c.b16 %v743, %v743
        %746 = vrot.lane.b32.xlu0 %v744, 64
        %v747 = vpop.permute.xlu0 %746
        %748 = vrot.lane.b32.xlu0 %v745, 64
        %v749 = vpop.permute.xlu0 %748
        %vm752 = vcmask 1043968
        %753 = vst.msk [vmem:[%s426] sm:$0xf] %vm752, %v747
        %754 = vst.msk [vmem:[%s426 + $0x4] sm:$0xf] %vm752, %v749
        %p755 = scmp.lt.s32.totalorder %s19, 1
        %s756 = scalar_select %p755, %s19, 1
        %p757 = scmp.lt.s32.totalorder %s20, 0
        %s758 = scalar_select %p757, %s20, 0
        %s759 = smul.addr %s756, 2
        %s760 = sadd.s32 %s758, %s759
        %s761 = smul.addr %s760, 4
        %s762 = scalar_lea.vmem %s4, %s761
        // Predicated region
        $region160: #{_lambda_.9} parent=146 // pred_check
          %p763 = pneg %p161
        $region161: #{_lambda_.9} parent=146 // pred_check_branch
          %765 = sbr.rel (%p763) target = $region163
        $region162: #{_lambda_.9} parent=146 // pred_region
          _
        $region163: #{_lambda_.9} parent=146 // pred_fallthru
          _
      $region147: #{_lambda_.9} parent=5 // pred_fallthru
        _
      %p766 = scmp.le.s32.totalorder 2, %s10
      // Predicated region
      $region164: #{_lambda_.9} parent=5 // pred_check
        %p767 = pneg %p766
      $region165: #{_lambda_.9} parent=5 // pred_check_branch
        %769 = sbr.rel (%p767) target = $region167
      $region166: #{_lambda_.9} parent=5 // pred_region
        %s770 = ssub.s32 %s10, 2
        // Predicated region
        $region168: #{_lambda_.9} parent=166 // pred_check
          %p771 = pneg %p167
        $region169: #{_lambda_.9} parent=166 // pred_check_branch
          %773 = sbr.rel (%p771) target = $region171
        $region170: #{_lambda_.9} parent=166 // pred_region
          %p774 = scmp.lt.s32.totalorder %s21, 1
          %s775 = scalar_select %p774, %s21, 1
          %p776 = scmp.lt.s32.totalorder %s22, 0
          %s777 = scalar_select %p776, %s22, 0
          %s778 = smul.addr %s775, 2
          %s779 = sadd.s32 %s777, %s778
          %s780 = smul.addr %s779, 4
          %s781 = scalar_lea.vmem %s4, %s780
        $region171: #{_lambda_.9} parent=166 // pred_fallthru
          _
      $region167: #{_lambda_.9} parent=5 // pred_fallthru
        _
    $region6: #{_lambda_.9} parent=1 // loop_footer
      %s14 = sadd.s32 1, %s10
    $region7: #{_lambda_.9} parent=1 // loop_footer_branch
      %9 = sbr.rel target = $region3
    $region8: #{_lambda_.9} parent=1 // loop_exit
      _

// kernel: _lambda_.10
$region0: #{_lambda_.10}
  #allocation0 [shape = 'u32[]', space=smem, size = 0x4, offset = 0x4, fixed_abs, tag = 'smem constant byte address 0x4 - core index']
  #allocation1 [shape = 'u32[144,128]{1,0:T(1,128)}', space=vmem, size = 0x12000, scoped, tag = 'internal scratch']
  %s0 = inlined_call_operand.vmem [shape: bf16[32,128], index: 0, kind: input, shape index: {}]
  %s1 = inlined_call_operand.vmem [shape: bf16[128,128], index: 1, kind: input, shape index: {}]
  %s2 = inlined_call_operand.vmem [shape: f32[1,128], index: 2, kind: input, shape index: {}]
  %s3 = inlined_call_operand.vmem [shape: bf16[32,128], index: 3, kind: input, shape index: {}, may-alias: {3,4}]
  %s4 = inlined_call_operand.vmem [shape: bf16[32,128], index: 4, kind: output, shape index: {}, may-alias: {3,4}]
  %s5 = sld [smem:[#allocation0]]
  $region26: #{_lambda_.10} parent=0
    _
  %s7 = ssub.s32 1, %s5
  %s8 = scalar_select 0, %s7, %s5
  // Predicated region
  $region2: #{_lambda_.10} parent=0 // pred_check
    _
  $region3: #{_lambda_.10} parent=0 // pred_check_branch
    %10 = sbr.rel (0) target = $region5
  $region4: #{_lambda_.10} parent=0 // pred_region
    _
  $region5: #{_lambda_.10} parent=0 // pred_fallthru
    _
  // Predicated region
  $region6: #{_lambda_.10} parent=0 // pred_check
    _
  $region7: #{_lambda_.10} parent=0 // pred_check_branch
    %12 = sbr.rel (0) target = $region9
  $region8: #{_lambda_.10} parent=0 // pred_region
    _
  $region9: #{_lambda_.10} parent=0 // pred_fallthru
    _
  // Predicated region
  $region10: #{_lambda_.10} parent=0 // pred_check
    _
  $region11: #{_lambda_.10} parent=0 // pred_check_branch
    %14 = sbr.rel (0) target = $region13
  $region12: #{_lambda_.10} parent=0 // pred_region
    _
  $region13: #{_lambda_.10} parent=0 // pred_fallthru
    _
  // Predicated region
  $region14: #{_lambda_.10} parent=0 // pred_check
    _
  $region15: #{_lambda_.10} parent=0 // pred_check_branch
    %16 = sbr.rel (0) target = $region17
  $region16: #{_lambda_.10} parent=0 // pred_region
    _
  $region17: #{_lambda_.10} parent=0 // pred_fallthru
    _
  %v18 = vld [vmem:[%s0] sm:$0xf]
  %v19 = vld [vmem:[%s0 + $0x4] sm:$0xf]
  %v20 = vld [vmem:[%s0 + $0x8] sm:$0xf]
  %v21 = vld [vmem:[%s0 + $0xc] sm:$0xf]
  %v22 = vld [vmem:[%s1] sm:$0xf]
  %v23 = vld [vmem:[%s1 + $0x4] sm:$0xf]
  %v24 = vld [vmem:[%s1 + $0x8] sm:$0xf]
  %v25 = vld [vmem:[%s1 + $0xc] sm:$0xf]
  %v26 = vld [vmem:[%s1 + $0x10] sm:$0xf]
  %v27 = vld [vmem:[%s1 + $0x14] sm:$0xf]
  %v28 = vld [vmem:[%s1 + $0x18] sm:$0xf]
  %v29 = vld [vmem:[%s1 + $0x1c] sm:$0xf]
  %v30 = vld [vmem:[%s1 + $0x20] sm:$0xf]
  %v31 = vld [vmem:[%s1 + $0x24] sm:$0xf]
  %v32 = vld [vmem:[%s1 + $0x28] sm:$0xf]
  %v33 = vld [vmem:[%s1 + $0x2c] sm:$0xf]
  %v34 = vld [vmem:[%s1 + $0x30] sm:$0xf]
  %v35 = vld [vmem:[%s1 + $0x34] sm:$0xf]
  %v36 = vld [vmem:[%s1 + $0x38] sm:$0xf]
  %v37 = vld [vmem:[%s1 + $0x3c] sm:$0xf]
  %v42 = vunpack.c.l.b16 %v18
  %v43 = vunpack.c.l.b16 %v19
  %v44 = vunpack.c.l.b16 %v20
  %v45 = vunpack.c.l.b16 %v21
  %v46 = vpack.c.b16 %v43, %v42
  %v47 = vpack.c.b16 %v45, %v44
  %v66 = vunpack.c.l.b16 %v22
  %v67 = vunpack.c.l.b16 %v23
  %v68 = vunpack.c.l.b16 %v24
  %v69 = vunpack.c.l.b16 %v25
  %v70 = vunpack.c.l.b16 %v26
  %v71 = vunpack.c.l.b16 %v27
  %v72 = vunpack.c.l.b16 %v28
  %v73 = vunpack.c.l.b16 %v29
  %v74 = vunpack.c.l.b16 %v30
  %v75 = vunpack.c.l.b16 %v31
  %v76 = vunpack.c.l.b16 %v32
  %v77 = vunpack.c.l.b16 %v33
  %v78 = vunpack.c.l.b16 %v34
  %v79 = vunpack.c.l.b16 %v35
  %v80 = vunpack.c.l.b16 %v36
  %v81 = vunpack.c.l.b16 %v37
  %v82 = vpack.c.b16 %v67, %v66
  %v83 = vpack.c.b16 %v69, %v68
  %v84 = vpack.c.b16 %v71, %v70
  %v85 = vpack.c.b16 %v73, %v72
  %v86 = vpack.c.b16 %v75, %v74
  %v87 = vpack.c.b16 %v77, %v76
  %v88 = vpack.c.b16 %v79, %v78
  %v89 = vpack.c.b16 %v81, %v80
  %98 = vmatprep.subr.bf16.mxu0 0
  %99 = vmatpush1.bf16.msra.mxu0 %v82
  %100 = vmatprep.subr.bf16.mxu0 0
  %101 = vmatpush1.bf16.msra.mxu0 %v83
  %102 = vmatprep.subr.bf16.mxu0 0
  %103 = vmatpush1.bf16.msra.mxu0 %v84
  %104 = vmatprep.subr.bf16.mxu0 0
  %105 = vmatpush1.bf16.msra.mxu0 %v85
  %106 = vmatprep.subr.bf16.mxu0 0
  %107 = vmatpush1.bf16.msra.mxu0 %v86
  %108 = vmatprep.subr.bf16.mxu0 0
  %109 = vmatpush1.bf16.msra.mxu0 %v87
  %110 = vmatprep.subr.bf16.mxu0 0
  %111 = vmatpush1.bf16.msra.mxu0 %v88
  %112 = vmatprep.subr.bf16.mxu0 0
  %113 = vmatpush1.bf16.msra.mxu0 %v89
  %114 = vmatprep.subr.bf16.mxu0 0
  %115 = vmatpush1.bf16.msra.mxu0 0
  %116 = vmatprep.subr.bf16.mxu0 0
  %117 = vmatpush1.bf16.msra.mxu0 0
  %118 = vmatprep.subr.bf16.mxu0 0
  %119 = vmatpush1.bf16.msra.mxu0 0
  %120 = vmatprep.subr.bf16.mxu0 0
  %121 = vmatpush1.bf16.msra.mxu0 0
  %122 = vmatprep.subr.bf16.mxu0 0
  %123 = vmatpush1.bf16.msra.mxu0 0
  %124 = vmatprep.subr.bf16.mxu0 0
  %125 = vmatpush1.bf16.msra.mxu0 0
  %126 = vmatprep.subr.bf16.mxu0 0
  %127 = vmatpush1.bf16.msra.mxu0 0
  %128 = vmatprep.subr.bf16.mxu0 0
  %129 = vmatpush1.bf16.msra.mxu0 0
  %130 = vmatprep.mubr.bf16.mxu0 0
  %131 = vmatmul.mubr.bf16.gmra.mrb[0].mxu0 %v46
  %v132 = vpop.f32.mrb[0].mxu0
  %v133 = vadd.f32 0.0, %v132
  %v134 = vpop.f32.mrb[0].mxu0
  %v135 = vpop.f32.mrb[0].mxu0
  %v136 = vadd.f32 0.0, %v135
  %v137 = vpop.f32.mrb[0].mxu0
  %138 = vmatprep.mubr.bf16.mxu0 0
  %139 = vmatmul.mubr.bf16.gmra.mrb[0].mxu0 %v47
  %v140 = vpop.f32.mrb[0].mxu0
  %v141 = vadd.f32 0.0, %v140
  %v142 = vpop.f32.mrb[0].mxu0
  %v143 = vpop.f32.mrb[0].mxu0
  %v144 = vadd.f32 0.0, %v143
  %v145 = vpop.f32.mrb[0].mxu0
  %146 = vdwg.mxu0
  %v147 = vld [vmem:[%s3] sm:$0xf]
  %v148 = vld [vmem:[%s3 + $0x4] sm:$0xf]
  %v149 = vld [vmem:[%s3 + $0x8] sm:$0xf]
  %v150 = vld [vmem:[%s3 + $0xc] sm:$0xf]
  %v151 = vunpack.c.l.bf16 %v147
  %v152 = vunpack.c.l.bf16 %v148
  %v153 = vunpack.c.l.bf16 %v149
  %v154 = vunpack.c.l.bf16 %v150
  %v155 = vadd.f32 %v151, %v133
  %v156 = vadd.f32 %v152, %v136
  %v157 = vadd.f32 %v153, %v141
  %v158 = vadd.f32 %v154, %v144
  %v159 = vld [vmem:[%s2] sm:$0x1]
  %v161 = vlaneseq
  %v162 = vshrl.u32 %v161, 7
  %v163 = vsub.s32 0, %v162
  %v164 = vrot.slane %v159, %v163
  %v166 = vadd.f32 %v155, %v164
  %v167 = vadd.f32 %v156, %v164
  %v168 = vadd.f32 %v157, %v164
  %v169 = vadd.f32 %v158, %v164
  %v170 = vpack.c.bf16 %v167, %v166
  %v171 = vpack.c.bf16 %v169, %v168
  %v174 = vunpack.c.l.b16 %v170
  %v175 = vunpack.c.h.b16 %v170
  %v176 = vunpack.c.l.b16 %v171
  %v177 = vunpack.c.h.b16 %v171
  %v178 = vpack.c.b16 %v174, %v174
  %v179 = vpack.c.b16 %v175, %v175
  %v180 = vpack.c.b16 %v176, %v176
  %v181 = vpack.c.b16 %v177, %v177
  %186 = vst [vmem:[%s4] sm:$0xf] %v178
  %187 = vst [vmem:[%s4 + $0x4] sm:$0xf] %v179
  %188 = vst [vmem:[%s4 + $0x8] sm:$0xf] %v180
  %189 = vst [vmem:[%s4 + $0xc] sm:$0xf] %v181
  // Predicated region
  $region18: #{_lambda_.10} parent=0 // pred_check
    _
  $region19: #{_lambda_.10} parent=0 // pred_check_branch
    %191 = sbr.rel (0) target = $region21
  $region20: #{_lambda_.10} parent=0 // pred_region
    _
  $region21: #{_lambda_.10} parent=0 // pred_fallthru
    _
  // Predicated region
  $region22: #{_lambda_.10} parent=0 // pred_check
    _
  $region23: #{_lambda_.10} parent=0 // pred_check_branch
    %193 = sbr.rel (0) target = $region25
  $region24: #{_lambda_.10} parent=0 // pred_region
    _
  $region25: #{_lambda_.10} parent=0 // pred_fallthru
    _

// kernel: _lambda_.11
$region0: #{_lambda_.11}
  #allocation0 [shape = 'u32[]', space=smem, size = 0x4, offset = 0x4, fixed_abs, tag = 'smem constant byte address 0x4 - core index']
  #allocation1 [shape = 'u32[144,128]{1,0:T(1,128)}', space=vmem, size = 0x12000, scoped, tag = 'internal scratch']
  #allocation2 [shape = 'f32[32,128]{1,0:T(8,128)}', space=vmem, size = 0x4000, scoped, tag = 'scratch operand']
  #allocation3 [shape = 'bf16[32,128]{1,0:T(16,128)(2,1)}', space=vmem, size = 0x2000, scoped, tag = 'scratch operand']
  %s0 = inlined_call_operand.vmem [shape: bf16[32,128], index: 0, kind: input, shape index: {}, may-alias: {0,7}]
  %s1 = inlined_call_operand.vmem [shape: f32[1,128], index: 1, kind: input, shape index: {}]
  %s2 = inlined_call_operand.vmem [shape: f32[1,128], index: 2, kind: input, shape index: {}]
  %s3 = inlined_call_operand.vmem [shape: bf16[128,512], index: 3, kind: input, shape index: {}]
  %s4 = inlined_call_operand.vmem [shape: f32[1,512], index: 4, kind: input, shape index: {}]
  %s5 = inlined_call_operand.vmem [shape: bf16[512,128], index: 5, kind: input, shape index: {}]
  %s6 = inlined_call_operand.vmem [shape: f32[1,128], index: 6, kind: input, shape index: {}]
  %s7 = inlined_call_operand.vmem [shape: bf16[32,128], index: 7, kind: output, shape index: {}, may-alias: {0,7}]
  %s8 = sld [smem:[#allocation0]]
  $region46: #{_lambda_.11} parent=0
    _
  %s10 = ssub.s32 1, %s8
  %s11 = scalar_select 0, %s10, %s8
  // Predicated region
  $region2: #{_lambda_.11} parent=0 // pred_check
    _
  $region3: #{_lambda_.11} parent=0 // pred_check_branch
    %13 = sbr.rel (0) target = $region5
  $region4: #{_lambda_.11} parent=0 // pred_region
    _
  $region5: #{_lambda_.11} parent=0 // pred_fallthru
    _
  // Predicated region
  $region6: #{_lambda_.11} parent=0 // pred_check
    _
  $region7: #{_lambda_.11} parent=0 // pred_check_branch
    %15 = sbr.rel (0) target = $region9
  $region8: #{_lambda_.11} parent=0 // pred_region
    _
  $region9: #{_lambda_.11} parent=0 // pred_fallthru
    _
  // Predicated region
  $region10: #{_lambda_.11} parent=0 // pred_check
    _
  $region11: #{_lambda_.11} parent=0 // pred_check_branch
    %17 = sbr.rel (0) target = $region13
  $region12: #{_lambda_.11} parent=0 // pred_region
    _
  $region13: #{_lambda_.11} parent=0 // pred_fallthru
    _
  // Predicated region
  $region14: #{_lambda_.11} parent=0 // pred_check
    _
  $region15: #{_lambda_.11} parent=0 // pred_check_branch
    %19 = sbr.rel (0) target = $region17
  $region16: #{_lambda_.11} parent=0 // pred_region
    _
  $region17: #{_lambda_.11} parent=0 // pred_fallthru
    _
  // Predicated region
  $region18: #{_lambda_.11} parent=0 // pred_check
    _
  $region19: #{_lambda_.11} parent=0 // pred_check_branch
    %21 = sbr.rel (0) target = $region21
  $region20: #{_lambda_.11} parent=0 // pred_region
    _
  $region21: #{_lambda_.11} parent=0 // pred_fallthru
    _
  // Predicated region
  $region22: #{_lambda_.11} parent=0 // pred_check
    _
  $region23: #{_lambda_.11} parent=0 // pred_check_branch
    %23 = sbr.rel (0) target = $region25
  $region24: #{_lambda_.11} parent=0 // pred_region
    _
  $region25: #{_lambda_.11} parent=0 // pred_fallthru
    _
  // Predicated region
  $region26: #{_lambda_.11} parent=0 // pred_check
    _
  $region27: #{_lambda_.11} parent=0 // pred_check_branch
    %25 = sbr.rel (0) target = $region29
  $region28: #{_lambda_.11} parent=0 // pred_region
    _
  $region29: #{_lambda_.11} parent=0 // pred_fallthru
    _
  %p27 = scmp.eq.s32.totalorder 0, 0
  // Predicated region
  $region30: #{_lambda_.11} parent=0 // pred_check
    %p28 = pneg %p27
  $region31: #{_lambda_.11} parent=0 // pred_check_branch
    %30 = sbr.rel (%p28) target = $region33
  $region32: #{_lambda_.11} parent=0 // pred_region
    %v31 = vld [vmem:[%s0] sm:$0xf]
    %v32 = vld [vmem:[%s0 + $0x4] sm:$0xf]
    %v33 = vld [vmem:[%s0 + $0x8] sm:$0xf]
    %v34 = vld [vmem:[%s0 + $0xc] sm:$0xf]
    %v35 = vunpack.c.l.bf16 %v31
    %v36 = vunpack.c.l.bf16 %v32
    %v37 = vunpack.c.l.bf16 %v33
    %v38 = vunpack.c.l.bf16 %v34
    %39 = vadd.xlane.f32.xlu0 %v35
    %v40 = vpop.xlane.xlu0 %39
    %41 = vadd.xlane.f32.xlu0 %v36
    %v42 = vpop.xlane.xlu0 %41
    %43 = vadd.xlane.f32.xlu0 %v37
    %v44 = vpop.xlane.xlu0 %43
    %45 = vadd.xlane.f32.xlu0 %v38
    %v46 = vpop.xlane.xlu0 %45
    %v47 = vrcp.pop 128.0
    %v48 = vmul.f32 %v40, %v47
    %v49 = vmul.f32 %v42, %v47
    %v50 = vmul.f32 %v44, %v47
    %v51 = vmul.f32 %v46, %v47
    %v52 = vsub.f32 %v35, %v48
    %v53 = vsub.f32 %v36, %v49
    %v54 = vsub.f32 %v37, %v50
    %v55 = vsub.f32 %v38, %v51
    %v56 = vmul.f32 %v52, %v52
    %v57 = vmul.f32 %v53, %v53
    %v58 = vmul.f32 %v54, %v54
    %v59 = vmul.f32 %v55, %v55
    %60 = vadd.xlane.f32.xlu0 %v56
    %v61 = vpop.xlane.xlu0 %60
    %62 = vadd.xlane.f32.xlu0 %v57
    %v63 = vpop.xlane.xlu0 %62
    %64 = vadd.xlane.f32.xlu0 %v58
    %v65 = vpop.xlane.xlu0 %64
    %66 = vadd.xlane.f32.xlu0 %v59
    %v67 = vpop.xlane.xlu0 %66
    %v68 = vmul.f32 %v61, %v47
    %v69 = vmul.f32 %v63, %v47
    %v70 = vmul.f32 %v65, %v47
    %v71 = vmul.f32 %v67, %v47
    %v72 = vadd.f32 %v68, 1e-05
    %v73 = vadd.f32 %v69, 1e-05
    %v74 = vadd.f32 %v70, 1e-05
    %v75 = vadd.f32 %v71, 1e-05
    %v76 = vrsqrt.pop %v72
    %v77 = vrsqrt.pop %v73
    %v78 = vrsqrt.pop %v74
    %v79 = vrsqrt.pop %v75
    %v80 = vmul.f32 %v52, %v76
    %v81 = vmul.f32 %v53, %v77
    %v82 = vmul.f32 %v54, %v78
    %v83 = vmul.f32 %v55, %v79
    %v84 = vld [vmem:[%s1] sm:$0x1]
    %v86 = vlaneseq
    %v87 = vshrl.u32 %v86, 7
    %v88 = vsub.s32 0, %v87
    %v89 = vrot.slane %v84, %v88
    %v91 = vmul.f32 %v80, %v89
    %v92 = vmul.f32 %v81, %v89
    %v93 = vmul.f32 %v82, %v89
    %v94 = vmul.f32 %v83, %v89
    %v95 = vld [vmem:[%s2] sm:$0x1]
    %v97 = vlaneseq
    %v98 = vshrl.u32 %v97, 7
    %v99 = vsub.s32 0, %v98
    %v100 = vrot.slane %v95, %v99
    %v102 = vadd.f32 %v91, %v100
    %v103 = vadd.f32 %v92, %v100
    %v104 = vadd.f32 %v93, %v100
    %v105 = vadd.f32 %v94, %v100
    %v106 = vpack.c.bf16 %v103, %v102
    %v107 = vpack.c.bf16 %v105, %v104
    %108 = vst [vmem:[#allocation3] sm:$0xff] %v106
    %109 = vst [vmem:[#allocation3 + $0x8] sm:$0xff] %v107
    %110 = vst [vmem:[#allocation2] sm:$0xff] 0.0
    %111 = vst [vmem:[#allocation2 + $0x8] sm:$0xff] 0.0
    %112 = vst [vmem:[#allocation2 + $0x10] sm:$0xff] 0.0
    %113 = vst [vmem:[#allocation2 + $0x18] sm:$0xff] 0.0
  $region33: #{_lambda_.11} parent=0 // pred_fallthru
    _
  %v114 = vld [vmem:[#allocation3] sm:$0xff]
  %v115 = vld [vmem:[#allocation3 + $0x8] sm:$0xff]
  %v116 = vld [vmem:[%s3] sm:$0xff]
  %v117 = vld [vmem:[%s3 + $0x8] sm:$0xff]
  %v118 = vld [vmem:[%s3 + $0x10] sm:$0xff]
  %v119 = vld [vmem:[%s3 + $0x18] sm:$0xff]
  %v120 = vld [vmem:[%s3 + $0x20] sm:$0xff]
  %v121 = vld [vmem:[%s3 + $0x28] sm:$0xff]
  %v122 = vld [vmem:[%s3 + $0x30] sm:$0xff]
  %v123 = vld [vmem:[%s3 + $0x38] sm:$0xff]
  %v124 = vld [vmem:[%s3 + $0x40] sm:$0xff]
  %v125 = vld [vmem:[%s3 + $0x48] sm:$0xff]
  %v126 = vld [vmem:[%s3 + $0x50] sm:$0xff]
  %v127 = vld [vmem:[%s3 + $0x58] sm:$0xff]
  %v128 = vld [vmem:[%s3 + $0x60] sm:$0xff]
  %v129 = vld [vmem:[%s3 + $0x68] sm:$0xff]
  %v130 = vld [vmem:[%s3 + $0x70] sm:$0xff]
  %v131 = vld [vmem:[%s3 + $0x78] sm:$0xff]
  %v132 = vld [vmem:[%s3 + $0x80] sm:$0xff]
  %v133 = vld [vmem:[%s3 + $0x88] sm:$0xff]
  %v134 = vld [vmem:[%s3 + $0x90] sm:$0xff]
  %v135 = vld [vmem:[%s3 + $0x98] sm:$0xff]
  %v136 = vld [vmem:[%s3 + $0xa0] sm:$0xff]
  %v137 = vld [vmem:[%s3 + $0xa8] sm:$0xff]
  %v138 = vld [vmem:[%s3 + $0xb0] sm:$0xff]
  %v139 = vld [vmem:[%s3 + $0xb8] sm:$0xff]
  %v140 = vld [vmem:[%s3 + $0xc0] sm:$0xff]
  %v141 = vld [vmem:[%s3 + $0xc8] sm:$0xff]
  %v142 = vld [vmem:[%s3 + $0xd0] sm:$0xff]
  %v143 = vld [vmem:[%s3 + $0xd8] sm:$0xff]
  %v144 = vld [vmem:[%s3 + $0xe0] sm:$0xff]
  %v145 = vld [vmem:[%s3 + $0xe8] sm:$0xff]
  %v146 = vld [vmem:[%s3 + $0xf0] sm:$0xff]
  %v147 = vld [vmem:[%s3 + $0xf8] sm:$0xff]
  %v148 = vld [vmem:[%s4] sm:$0xf]
  %v150 = vlaneseq
  %v151 = vshrl.u32 %v150, 7
  %v152 = vsub.s32 0, %v151
  %v153 = vrot.slane %v148, %v152
  %v154 = vlaneseq
  %v155 = vshrl.u32 %v154, 7
  %v156 = vsub.s32 1, %v155
  %v157 = vrot.slane %v148, %v156
  %v158 = vlaneseq
  %v159 = vshrl.u32 %v158, 7
  %v160 = vsub.s32 2, %v159
  %v161 = vrot.slane %v148, %v160
  %v162 = vlaneseq
  %v163 = vshrl.u32 %v162, 7
  %v164 = vsub.s32 3, %v163
  %v165 = vrot.slane %v148, %v164
  %v202 = vunpack.c.l.b16 %v116
  %v203 = vunpack.c.h.b16 %v116
  %v204 = vunpack.c.l.b16 %v117
  %v205 = vunpack.c.h.b16 %v117
  %v206 = vunpack.c.l.b16 %v118
  %v207 = vunpack.c.h.b16 %v118
  %v208 = vunpack.c.l.b16 %v119
  %v209 = vunpack.c.h.b16 %v119
  %v210 = vunpack.c.l.b16 %v120
  %v211 = vunpack.c.h.b16 %v120
  %v212 = vunpack.c.l.b16 %v121
  %v213 = vunpack.c.h.b16 %v121
  %v214 = vunpack.c.l.b16 %v122
  %v215 = vunpack.c.h.b16 %v122
  %v216 = vunpack.c.l.b16 %v123
  %v217 = vunpack.c.h.b16 %v123
  %v218 = vunpack.c.l.b16 %v124
  %v219 = vunpack.c.h.b16 %v124
  %v220 = vunpack.c.l.b16 %v125
  %v221 = vunpack.c.h.b16 %v125
  %v222 = vunpack.c.l.b16 %v126
  %v223 = vunpack.c.h.b16 %v126
  %v224 = vunpack.c.l.b16 %v127
  %v225 = vunpack.c.h.b16 %v127
  %v226 = vunpack.c.l.b16 %v128
  %v227 = vunpack.c.h.b16 %v128
  %v228 = vunpack.c.l.b16 %v129
  %v229 = vunpack.c.h.b16 %v129
  %v230 = vunpack.c.l.b16 %v130
  %v231 = vunpack.c.h.b16 %v130
  %v232 = vunpack.c.l.b16 %v131
  %v233 = vunpack.c.h.b16 %v131
  %v234 = vunpack.c.l.b16 %v132
  %v235 = vunpack.c.h.b16 %v132
  %v236 = vunpack.c.l.b16 %v133
  %v237 = vunpack.c.h.b16 %v133
  %v238 = vunpack.c.l.b16 %v134
  %v239 = vunpack.c.h.b16 %v134
  %v240 = vunpack.c.l.b16 %v135
  %v241 = vunpack.c.h.b16 %v135
  %v242 = vunpack.c.l.b16 %v136
  %v243 = vunpack.c.h.b16 %v136
  %v244 = vunpack.c.l.b16 %v137
  %v245 = vunpack.c.h.b16 %v137
  %v246 = vunpack.c.l.b16 %v138
  %v247 = vunpack.c.h.b16 %v138
  %v248 = vunpack.c.l.b16 %v139
  %v249 = vunpack.c.h.b16 %v139
  %v250 = vunpack.c.l.b16 %v140
  %v251 = vunpack.c.h.b16 %v140
  %v252 = vunpack.c.l.b16 %v141
  %v253 = vunpack.c.h.b16 %v141
  %v254 = vunpack.c.l.b16 %v142
  %v255 = vunpack.c.h.b16 %v142
  %v256 = vunpack.c.l.b16 %v143
  %v257 = vunpack.c.h.b16 %v143
  %v258 = vunpack.c.l.b16 %v144
  %v259 = vunpack.c.h.b16 %v144
  %v260 = vunpack.c.l.b16 %v145
  %v261 = vunpack.c.h.b16 %v145
  %v262 = vunpack.c.l.b16 %v146
  %v263 = vunpack.c.h.b16 %v146
  %v264 = vunpack.c.l.b16 %v147
  %v265 = vunpack.c.h.b16 %v147
  %v266 = vpack.c.b16 %v206, %v202
  %v267 = vpack.c.b16 %v207, %v203
  %v268 = vpack.c.b16 %v208, %v204
  %v269 = vpack.c.b16 %v209, %v205
  %v270 = vpack.c.b16 %v214, %v210
  %v271 = vpack.c.b16 %v215, %v211
  %v272 = vpack.c.b16 %v216, %v212
  %v273 = vpack.c.b16 %v217, %v213
  %v274 = vpack.c.b16 %v222, %v218
  %v275 = vpack.c.b16 %v223, %v219
  %v276 = vpack.c.b16 %v224, %v220
  %v277 = vpack.c.b16 %v225, %v221
  %v278 = vpack.c.b16 %v230, %v226
  %v279 = vpack.c.b16 %v231, %v227
  %v280 = vpack.c.b16 %v232, %v228
  %v281 = vpack.c.b16 %v233, %v229
  %v282 = vpack.c.b16 %v238, %v234
  %v283 = vpack.c.b16 %v239, %v235
  %v284 = vpack.c.b16 %v240, %v236
  %v285 = vpack.c.b16 %v241, %v237
  %v286 = vpack.c.b16 %v246, %v242
  %v287 = vpack.c.b16 %v247, %v243
  %v288 = vpack.c.b16 %v248, %v244
  %v289 = vpack.c.b16 %v249, %v245
  %v290 = vpack.c.b16 %v254, %v250
  %v291 = vpack.c.b16 %v255, %v251
  %v292 = vpack.c.b16 %v256, %v252
  %v293 = vpack.c.b16 %v257, %v253
  %v294 = vpack.c.b16 %v262, %v258
  %v295 = vpack.c.b16 %v263, %v259
  %v296 = vpack.c.b16 %v264, %v260
  %v297 = vpack.c.b16 %v265, %v261
  %330 = vmatprep.subr.bf16.mxu0 %v267
  %331 = vmatpush1.bf16.msra.mxu0 %v266
  %332 = vmatprep.subr.bf16.mxu0 %v271
  %333 = vmatpush1.bf16.msra.mxu0 %v270
  %334 = vmatprep.subr.bf16.mxu0 %v275
  %335 = vmatpush1.bf16.msra.mxu0 %v274
  %336 = vmatprep.subr.bf16.mxu0 %v279
  %337 = vmatpush1.bf16.msra.mxu0 %v278
  %338 = vmatprep.subr.bf16.mxu0 %v283
  %339 = vmatpush1.bf16.msra.mxu0 %v282
  %340 = vmatprep.subr.bf16.mxu0 %v287
  %341 = vmatpush1.bf16.msra.mxu0 %v286
  %342 = vmatprep.subr.bf16.mxu0 %v291
  %343 = vmatpush1.bf16.msra.mxu0 %v290
  %344 = vmatprep.subr.bf16.mxu0 %v295
  %345 = vmatpush1.bf16.msra.mxu0 %v294
  %346 = vmatprep.subr.bf16.mxu0 0
  %347 = vmatpush1.bf16.msra.mxu0 0
  %348 = vmatprep.subr.bf16.mxu0 0
  %349 = vmatpush1.bf16.msra.mxu0 0
  %350 = vmatprep.subr.bf16.mxu0 0
  %351 = vmatpush1.bf16.msra.mxu0 0
  %352 = vmatprep.subr.bf16.mxu0 0
  %353 = vmatpush1.bf16.msra.mxu0 0
  %354 = vmatprep.subr.bf16.mxu0 0
  %355 = vmatpush1.bf16.msra.mxu0 0
  %356 = vmatprep.subr.bf16.mxu0 0
  %357 = vmatpush1.bf16.msra.mxu0 0
  %358 = vmatprep.subr.bf16.mxu0 0
  %359 = vmatpush1.bf16.msra.mxu0 0
  %360 = vmatprep.subr.bf16.mxu0 0
  %361 = vmatpush1.bf16.msra.mxu0 0
  %362 = vmatprep.mubr.bf16.mxu0 0
  %363 = vmatmul.mubr.bf16.gmra.mrb[0].mxu0 %v114
  %v364 = vpop.f32.mrb[0].mxu0
  %v365 = vadd.f32 %v153, %v364
  %v366 = vpop.f32.mrb[0].mxu0
  %v367 = vadd.f32 %v157, %v366
  %v368 = vpop.f32.mrb[0].mxu0
  %v369 = vadd.f32 %v153, %v368
  %v370 = vpop.f32.mrb[0].mxu0
  %v371 = vadd.f32 %v157, %v370
  %372 = vmatprep.mubr.bf16.mxu0 0
  %373 = vmatmul.mubr.bf16.gmra.mrb[0].mxu0 %v115
  %v374 = vpop.f32.mrb[0].mxu0
  %v375 = vadd.f32 %v153, %v374
  %v376 = vpop.f32.mrb[0].mxu0
  %v377 = vadd.f32 %v157, %v376
  %v378 = vpop.f32.mrb[0].mxu0
  %v379 = vadd.f32 %v153, %v378
  %v380 = vpop.f32.mrb[0].mxu0
  %v381 = vadd.f32 %v157, %v380
  %382 = vdwg.mxu0
  %383 = vmatprep.subr.bf16.mxu0 %v269
  %384 = vmatpush1.bf16.msra.mxu0 %v268
  %385 = vmatprep.subr.bf16.mxu0 %v273
  %386 = vmatpush1.bf16.msra.mxu0 %v272
  %387 = vmatprep.subr.bf16.mxu0 %v277
  %388 = vmatpush1.bf16.msra.mxu0 %v276
  %389 = vmatprep.subr.bf16.mxu0 %v281
  %390 = vmatpush1.bf16.msra.mxu0 %v280
  %391 = vmatprep.subr.bf16.mxu0 %v285
  %392 = vmatpush1.bf16.msra.mxu0 %v284
  %393 = vmatprep.subr.bf16.mxu0 %v289
  %394 = vmatpush1.bf16.msra.mxu0 %v288
  %395 = vmatprep.subr.bf16.mxu0 %v293
  %396 = vmatpush1.bf16.msra.mxu0 %v292
  %397 = vmatprep.subr.bf16.mxu0 %v297
  %398 = vmatpush1.bf16.msra.mxu0 %v296
  %399 = vmatprep.subr.bf16.mxu0 0
  %400 = vmatpush1.bf16.msra.mxu0 0
  %401 = vmatprep.subr.bf16.mxu0 0
  %402 = vmatpush1.bf16.msra.mxu0 0
  %403 = vmatprep.subr.bf16.mxu0 0
  %404 = vmatpush1.bf16.msra.mxu0 0
  %405 = vmatprep.subr.bf16.mxu0 0
  %406 = vmatpush1.bf16.msra.mxu0 0
  %407 = vmatprep.subr.bf16.mxu0 0
  %408 = vmatpush1.bf16.msra.mxu0 0
  %409 = vmatprep.subr.bf16.mxu0 0
  %410 = vmatpush1.bf16.msra.mxu0 0
  %411 = vmatprep.subr.bf16.mxu0 0
  %412 = vmatpush1.bf16.msra.mxu0 0
  %413 = vmatprep.subr.bf16.mxu0 0
  %414 = vmatpush1.bf16.msra.mxu0 0
  %415 = vmatprep.mubr.bf16.mxu0 0
  %416 = vmatmul.mubr.bf16.gmra.mrb[0].mxu0 %v114
  %v417 = vpop.f32.mrb[0].mxu0
  %v418 = vadd.f32 %v161, %v417
  %v419 = vpop.f32.mrb[0].mxu0
  %v420 = vadd.f32 %v165, %v419
  %v421 = vpop.f32.mrb[0].mxu0
  %v422 = vadd.f32 %v161, %v421
  %v423 = vpop.f32.mrb[0].mxu0
  %v424 = vadd.f32 %v165, %v423
  %425 = vmatprep.mubr.bf16.mxu0 0
  %426 = vmatmul.mubr.bf16.gmra.mrb[0].mxu0 %v115
  %v427 = vpop.f32.mrb[0].mxu0
  %v428 = vadd.f32 %v161, %v427
  %v429 = vpop.f32.mrb[0].mxu0
  %v430 = vadd.f32 %v165, %v429
  %v431 = vpop.f32.mrb[0].mxu0
  %v432 = vadd.f32 %v161, %v431
  %v433 = vpop.f32.mrb[0].mxu0
  %v434 = vadd.f32 %v165, %v433
  %435 = vdwg.mxu0
  %v436 = vmul.f32 %v365, 0.5
  %v437 = vmul.f32 %v367, 0.5
  %v438 = vmul.f32 %v418, 0.5
  %v439 = vmul.f32 %v420, 0.5
  %v440 = vmul.f32 %v369, 0.5
  %v441 = vmul.f32 %v371, 0.5
  %v442 = vmul.f32 %v422, 0.5
  %v443 = vmul.f32 %v424, 0.5
  %v444 = vmul.f32 %v375, 0.5
  %v445 = vmul.f32 %v377, 0.5
  %v446 = vmul.f32 %v428, 0.5
  %v447 = vmul.f32 %v430, 0.5
  %v448 = vmul.f32 %v379, 0.5
  %v449 = vmul.f32 %v381, 0.5
  %v450 = vmul.f32 %v432, 0.5
  %v451 = vmul.f32 %v434, 0.5
  %v452 = vmul.f32 %v365, 0.044715
  %v453 = vmul.f32 %v367, 0.044715
  %v454 = vmul.f32 %v418, 0.044715
  %v455 = vmul.f32 %v420, 0.044715
  %v456 = vmul.f32 %v369, 0.044715
  %v457 = vmul.f32 %v371, 0.044715
  %v458 = vmul.f32 %v422, 0.044715
  %v459 = vmul.f32 %v424, 0.044715
  %v460 = vmul.f32 %v375, 0.044715
  %v461 = vmul.f32 %v377, 0.044715
  %v462 = vmul.f32 %v428, 0.044715
  %v463 = vmul.f32 %v430, 0.044715
  %v464 = vmul.f32 %v379, 0.044715
  %v465 = vmul.f32 %v381, 0.044715
  %v466 = vmul.f32 %v432, 0.044715
  %v467 = vmul.f32 %v434, 0.044715
  %v468 = vmul.f32 %v452, %v365
  %v469 = vmul.f32 %v453, %v367
  %v470 = vmul.f32 %v454, %v418
  %v471 = vmul.f32 %v455, %v420
  %v472 = vmul.f32 %v456, %v369
  %v473 = vmul.f32 %v457, %v371
  %v474 = vmul.f32 %v458, %v422
  %v475 = vmul.f32 %v459, %v424
  %v476 = vmul.f32 %v460, %v375
  %v477 = vmul.f32 %v461, %v377
  %v478 = vmul.f32 %v462, %v428
  %v479 = vmul.f32 %v463, %v430
  %v480 = vmul.f32 %v464, %v379
  %v481 = vmul.f32 %v465, %v381
  %v482 = vmul.f32 %v466, %v432
  %v483 = vmul.f32 %v467, %v434
  %v484 = vmul.f32 %v468, %v365
  %v485 = vmul.f32 %v469, %v367
  %v486 = vmul.f32 %v470, %v418
  %v487 = vmul.f32 %v471, %v420
  %v488 = vmul.f32 %v472, %v369
  %v489 = vmul.f32 %v473, %v371
  %v490 = vmul.f32 %v474, %v422
  %v491 = vmul.f32 %v475, %v424
  %v492 = vmul.f32 %v476, %v375
  %v493 = vmul.f32 %v477, %v377
  %v494 = vmul.f32 %v478, %v428
  %v495 = vmul.f32 %v479, %v430
  %v496 = vmul.f32 %v480, %v379
  %v497 = vmul.f32 %v481, %v381
  %v498 = vmul.f32 %v482, %v432
  %v499 = vmul.f32 %v483, %v434
  %v500 = vadd.f32 %v365, %v484
  %v501 = vadd.f32 %v367, %v485
  %v502 = vadd.f32 %v418, %v486
  %v503 = vadd.f32 %v420, %v487
  %v504 = vadd.f32 %v369, %v488
  %v505 = vadd.f32 %v371, %v489
  %v506 = vadd.f32 %v422, %v490
  %v507 = vadd.f32 %v424, %v491
  %v508 = vadd.f32 %v375, %v492
  %v509 = vadd.f32 %v377, %v493
  %v510 = vadd.f32 %v428, %v494
  %v511 = vadd.f32 %v430, %v495
  %v512 = vadd.f32 %v379, %v496
  %v513 = vadd.f32 %v381, %v497
  %v514 = vadd.f32 %v432, %v498
  %v515 = vadd.f32 %v434, %v499
  %v516 = vmul.f32 %v500, 0.7978846
  %v517 = vmul.f32 %v501, 0.7978846
  %v518 = vmul.f32 %v502, 0.7978846
  %v519 = vmul.f32 %v503, 0.7978846
  %v520 = vmul.f32 %v504, 0.7978846
  %v521 = vmul.f32 %v505, 0.7978846
  %v522 = vmul.f32 %v506, 0.7978846
  %v523 = vmul.f32 %v507, 0.7978846
  %v524 = vmul.f32 %v508, 0.7978846
  %v525 = vmul.f32 %v509, 0.7978846
  %v526 = vmul.f32 %v510, 0.7978846
  %v527 = vmul.f32 %v511, 0.7978846
  %v528 = vmul.f32 %v512, 0.7978846
  %v529 = vmul.f32 %v513, 0.7978846
  %v530 = vmul.f32 %v514, 0.7978846
  %v531 = vmul.f32 %v515, 0.7978846
  %v532 = vtanh.pop %v516
  %v533 = vtanh.pop %v517
  %v534 = vtanh.pop %v518
  %v535 = vtanh.pop %v519
  %v536 = vtanh.pop %v520
  %v537 = vtanh.pop %v521
  %v538 = vtanh.pop %v522
  %v539 = vtanh.pop %v523
  %v540 = vtanh.pop %v524
  %v541 = vtanh.pop %v525
  %v542 = vtanh.pop %v526
  %v543 = vtanh.pop %v527
  %v544 = vtanh.pop %v528
  %v545 = vtanh.pop %v529
  %v546 = vtanh.pop %v530
  %v547 = vtanh.pop %v531
  %v548 = vadd.f32 %v532, 1.0
  %v549 = vadd.f32 %v533, 1.0
  %v550 = vadd.f32 %v534, 1.0
  %v551 = vadd.f32 %v535, 1.0
  %v552 = vadd.f32 %v536, 1.0
  %v553 = vadd.f32 %v537, 1.0
  %v554 = vadd.f32 %v538, 1.0
  %v555 = vadd.f32 %v539, 1.0
  %v556 = vadd.f32 %v540, 1.0
  %v557 = vadd.f32 %v541, 1.0
  %v558 = vadd.f32 %v542, 1.0
  %v559 = vadd.f32 %v543, 1.0
  %v560 = vadd.f32 %v544, 1.0
  %v561 = vadd.f32 %v545, 1.0
  %v562 = vadd.f32 %v546, 1.0
  %v563 = vadd.f32 %v547, 1.0
  %v564 = vmul.f32 %v436, %v548
  %v565 = vmul.f32 %v437, %v549
  %v566 = vmul.f32 %v438, %v550
  %v567 = vmul.f32 %v439, %v551
  %v568 = vmul.f32 %v440, %v552
  %v569 = vmul.f32 %v441, %v553
  %v570 = vmul.f32 %v442, %v554
  %v571 = vmul.f32 %v443, %v555
  %v572 = vmul.f32 %v444, %v556
  %v573 = vmul.f32 %v445, %v557
  %v574 = vmul.f32 %v446, %v558
  %v575 = vmul.f32 %v447, %v559
  %v576 = vmul.f32 %v448, %v560
  %v577 = vmul.f32 %v449, %v561
  %v578 = vmul.f32 %v450, %v562
  %v579 = vmul.f32 %v451, %v563
  %v580 = vld [vmem:[#allocation2] sm:$0xff]
  %v581 = vld [vmem:[#allocation2 + $0x8] sm:$0xff]
  %v582 = vld [vmem:[#allocation2 + $0x10] sm:$0xff]
  %v583 = vld [vmem:[#allocation2 + $0x18] sm:$0xff]
  %v584 = vpack.c.bf16 %v568, %v564
  %v585 = vpack.c.bf16 %v569, %v565
  %v586 = vpack.c.bf16 %v570, %v566
  %v587 = vpack.c.bf16 %v571, %v567
  %v588 = vpack.c.bf16 %v576, %v572
  %v589 = vpack.c.bf16 %v577, %v573
  %v590 = vpack.c.bf16 %v578, %v574
  %v591 = vpack.c.bf16 %v579, %v575
  %v592 = vld [vmem:[%s5] sm:$0xf]
  %v593 = vld [vmem:[%s5 + $0x4] sm:$0xf]
  %v594 = vld [vmem:[%s5 + $0x8] sm:$0xf]
  %v595 = vld [vmem:[%s5 + $0xc] sm:$0xf]
  %v596 = vld [vmem:[%s5 + $0x10] sm:$0xf]
  %v597 = vld [vmem:[%s5 + $0x14] sm:$0xf]
  %v598 = vld [vmem:[%s5 + $0x18] sm:$0xf]
  %v599 = vld [vmem:[%s5 + $0x1c] sm:$0xf]
  %v600 = vld [vmem:[%s5 + $0x20] sm:$0xf]
  %v601 = vld [vmem:[%s5 + $0x24] sm:$0xf]
  %v602 = vld [vmem:[%s5 + $0x28] sm:$0xf]
  %v603 = vld [vmem:[%s5 + $0x2c] sm:$0xf]
  %v604 = vld [vmem:[%s5 + $0x30] sm:$0xf]
  %v605 = vld [vmem:[%s5 + $0x34] sm:$0xf]
  %v606 = vld [vmem:[%s5 + $0x38] sm:$0xf]
  %v607 = vld [vmem:[%s5 + $0x3c] sm:$0xf]
  %v608 = vld [vmem:[%s5 + $0x40] sm:$0xf]
  %v609 = vld [vmem:[%s5 + $0x44] sm:$0xf]
  %v610 = vld [vmem:[%s5 + $0x48] sm:$0xf]
  %v611 = vld [vmem:[%s5 + $0x4c] sm:$0xf]
  %v612 = vld [vmem:[%s5 + $0x50] sm:$0xf]
  %v613 = vld [vmem:[%s5 + $0x54] sm:$0xf]
  %v614 = vld [vmem:[%s5 + $0x58] sm:$0xf]
  %v615 = vld [vmem:[%s5 + $0x5c] sm:$0xf]
  %v616 = vld [vmem:[%s5 + $0x60] sm:$0xf]
  %v617 = vld [vmem:[%s5 + $0x64] sm:$0xf]
  %v618 = vld [vmem:[%s5 + $0x68] sm:$0xf]
  %v619 = vld [vmem:[%s5 + $0x6c] sm:$0xf]
  %v620 = vld [vmem:[%s5 + $0x70] sm:$0xf]
  %v621 = vld [vmem:[%s5 + $0x74] sm:$0xf]
  %v622 = vld [vmem:[%s5 + $0x78] sm:$0xf]
  %v623 = vld [vmem:[%s5 + $0x7c] sm:$0xf]
  %v624 = vld [vmem:[%s5 + $0x80] sm:$0xf]
  %v625 = vld [vmem:[%s5 + $0x84] sm:$0xf]
  %v626 = vld [vmem:[%s5 + $0x88] sm:$0xf]
  %v627 = vld [vmem:[%s5 + $0x8c] sm:$0xf]
  %v628 = vld [vmem:[%s5 + $0x90] sm:$0xf]
  %v629 = vld [vmem:[%s5 + $0x94] sm:$0xf]
  %v630 = vld [vmem:[%s5 + $0x98] sm:$0xf]
  %v631 = vld [vmem:[%s5 + $0x9c] sm:$0xf]
  %v632 = vld [vmem:[%s5 + $0xa0] sm:$0xf]
  %v633 = vld [vmem:[%s5 + $0xa4] sm:$0xf]
  %v634 = vld [vmem:[%s5 + $0xa8] sm:$0xf]
  %v635 = vld [vmem:[%s5 + $0xac] sm:$0xf]
  %v636 = vld [vmem:[%s5 + $0xb0] sm:$0xf]
  %v637 = vld [vmem:[%s5 + $0xb4] sm:$0xf]
  %v638 = vld [vmem:[%s5 + $0xb8] sm:$0xf]
  %v639 = vld [vmem:[%s5 + $0xbc] sm:$0xf]
  %v640 = vld [vmem:[%s5 + $0xc0] sm:$0xf]
  %v641 = vld [vmem:[%s5 + $0xc4] sm:$0xf]
  %v642 = vld [vmem:[%s5 + $0xc8] sm:$0xf]
  %v643 = vld [vmem:[%s5 + $0xcc] sm:$0xf]
  %v644 = vld [vmem:[%s5 + $0xd0] sm:$0xf]
  %v645 = vld [vmem:[%s5 + $0xd4] sm:$0xf]
  %v646 = vld [vmem:[%s5 + $0xd8] sm:$0xf]
  %v647 = vld [vmem:[%s5 + $0xdc] sm:$0xf]
  %v648 = vld [vmem:[%s5 + $0xe0] sm:$0xf]
  %v649 = vld [vmem:[%s5 + $0xe4] sm:$0xf]
  %v650 = vld [vmem:[%s5 + $0xe8] sm:$0xf]
  %v651 = vld [vmem:[%s5 + $0xec] sm:$0xf]
  %v652 = vld [vmem:[%s5 + $0xf0] sm:$0xf]
  %v653 = vld [vmem:[%s5 + $0xf4] sm:$0xf]
  %v654 = vld [vmem:[%s5 + $0xf8] sm:$0xf]
  %v655 = vld [vmem:[%s5 + $0xfc] sm:$0xf]
  %v720 = vunpack.c.l.b16 %v592
  %v721 = vunpack.c.l.b16 %v593
  %v722 = vunpack.c.l.b16 %v594
  %v723 = vunpack.c.l.b16 %v595
  %v724 = vunpack.c.l.b16 %v596
  %v725 = vunpack.c.l.b16 %v597
  %v726 = vunpack.c.l.b16 %v598
  %v727 = vunpack.c.l.b16 %v599
  %v728 = vunpack.c.l.b16 %v600
  %v729 = vunpack.c.l.b16 %v601
  %v730 = vunpack.c.l.b16 %v602
  %v731 = vunpack.c.l.b16 %v603
  %v732 = vunpack.c.l.b16 %v604
  %v733 = vunpack.c.l.b16 %v605
  %v734 = vunpack.c.l.b16 %v606
  %v735 = vunpack.c.l.b16 %v607
  %v736 = vunpack.c.l.b16 %v608
  %v737 = vunpack.c.l.b16 %v609
  %v738 = vunpack.c.l.b16 %v610
  %v739 = vunpack.c.l.b16 %v611
  %v740 = vunpack.c.l.b16 %v612
  %v741 = vunpack.c.l.b16 %v613
  %v742 = vunpack.c.l.b16 %v614
  %v743 = vunpack.c.l.b16 %v615
  %v744 = vunpack.c.l.b16 %v616
  %v745 = vunpack.c.l.b16 %v617
  %v746 = vunpack.c.l.b16 %v618
  %v747 = vunpack.c.l.b16 %v619
  %v748 = vunpack.c.l.b16 %v620
  %v749 = vunpack.c.l.b16 %v621
  %v750 = vunpack.c.l.b16 %v622
  %v751 = vunpack.c.l.b16 %v623
  %v752 = vunpack.c.l.b16 %v624
  %v753 = vunpack.c.l.b16 %v625
  %v754 = vunpack.c.l.b16 %v626
  %v755 = vunpack.c.l.b16 %v627
  %v756 = vunpack.c.l.b16 %v628
  %v757 = vunpack.c.l.b16 %v629
  %v758 = vunpack.c.l.b16 %v630
  %v759 = vunpack.c.l.b16 %v631
  %v760 = vunpack.c.l.b16 %v632
  %v761 = vunpack.c.l.b16 %v633
  %v762 = vunpack.c.l.b16 %v634
  %v763 = vunpack.c.l.b16 %v635
  %v764 = vunpack.c.l.b16 %v636
  %v765 = vunpack.c.l.b16 %v637
  %v766 = vunpack.c.l.b16 %v638
  %v767 = vunpack.c.l.b16 %v639
  %v768 = vunpack.c.l.b16 %v640
  %v769 = vunpack.c.l.b16 %v641
  %v770 = vunpack.c.l.b16 %v642
  %v771 = vunpack.c.l.b16 %v643
  %v772 = vunpack.c.l.b16 %v644
  %v773 = vunpack.c.l.b16 %v645
  %v774 = vunpack.c.l.b16 %v646
  %v775 = vunpack.c.l.b16 %v647
  %v776 = vunpack.c.l.b16 %v648
  %v777 = vunpack.c.l.b16 %v649
  %v778 = vunpack.c.l.b16 %v650
  %v779 = vunpack.c.l.b16 %v651
  %v780 = vunpack.c.l.b16 %v652
  %v781 = vunpack.c.l.b16 %v653
  %v782 = vunpack.c.l.b16 %v654
  %v783 = vunpack.c.l.b16 %v655
  %v784 = vpack.c.b16 %v721, %v720
  %v785 = vpack.c.b16 %v723, %v722
  %v786 = vpack.c.b16 %v725, %v724
  %v787 = vpack.c.b16 %v727, %v726
  %v788 = vpack.c.b16 %v729, %v728
  %v789 = vpack.c.b16 %v731, %v730
  %v790 = vpack.c.b16 %v733, %v732
  %v791 = vpack.c.b16 %v735, %v734
  %v792 = vpack.c.b16 %v737, %v736
  %v793 = vpack.c.b16 %v739, %v738
  %v794 = vpack.c.b16 %v741, %v740
  %v795 = vpack.c.b16 %v743, %v742
  %v796 = vpack.c.b16 %v745, %v744
  %v797 = vpack.c.b16 %v747, %v746
  %v798 = vpack.c.b16 %v749, %v748
  %v799 = vpack.c.b16 %v751, %v750
  %v800 = vpack.c.b16 %v753, %v752
  %v801 = vpack.c.b16 %v755, %v754
  %v802 = vpack.c.b16 %v757, %v756
  %v803 = vpack.c.b16 %v759, %v758
  %v804 = vpack.c.b16 %v761, %v760
  %v805 = vpack.c.b16 %v763, %v762
  %v806 = vpack.c.b16 %v765, %v764
  %v807 = vpack.c.b16 %v767, %v766
  %v808 = vpack.c.b16 %v769, %v768
  %v809 = vpack.c.b16 %v771, %v770
  %v810 = vpack.c.b16 %v773, %v772
  %v811 = vpack.c.b16 %v775, %v774
  %v812 = vpack.c.b16 %v777, %v776
  %v813 = vpack.c.b16 %v779, %v778
  %v814 = vpack.c.b16 %v781, %v780
  %v815 = vpack.c.b16 %v783, %v782
  %848 = vmatprep.subr.bf16.mxu0 0
  %849 = vmatpush1.bf16.msra.mxu0 %v784
  %850 = vmatprep.subr.bf16.mxu0 0
  %851 = vmatpush1.bf16.msra.mxu0 %v785
  %852 = vmatprep.subr.bf16.mxu0 0
  %853 = vmatpush1.bf16.msra.mxu0 %v786
  %854 = vmatprep.subr.bf16.mxu0 0
  %855 = vmatpush1.bf16.msra.mxu0 %v787
  %856 = vmatprep.subr.bf16.mxu0 0
  %857 = vmatpush1.bf16.msra.mxu0 %v788
  %858 = vmatprep.subr.bf16.mxu0 0
  %859 = vmatpush1.bf16.msra.mxu0 %v789
  %860 = vmatprep.subr.bf16.mxu0 0
  %861 = vmatpush1.bf16.msra.mxu0 %v790
  %862 = vmatprep.subr.bf16.mxu0 0
  %863 = vmatpush1.bf16.msra.mxu0 %v791
  %864 = vmatprep.subr.bf16.mxu0 0
  %865 = vmatpush1.bf16.msra.mxu0 %v792
  %866 = vmatprep.subr.bf16.mxu0 0
  %867 = vmatpush1.bf16.msra.mxu0 %v793
  %868 = vmatprep.subr.bf16.mxu0 0
  %869 = vmatpush1.bf16.msra.mxu0 %v794
  %870 = vmatprep.subr.bf16.mxu0 0
  %871 = vmatpush1.bf16.msra.mxu0 %v795
  %872 = vmatprep.subr.bf16.mxu0 0
  %873 = vmatpush1.bf16.msra.mxu0 %v796
  %874 = vmatprep.subr.bf16.mxu0 0
  %875 = vmatpush1.bf16.msra.mxu0 %v797
  %876 = vmatprep.subr.bf16.mxu0 0
  %877 = vmatpush1.bf16.msra.mxu0 %v798
  %878 = vmatprep.subr.bf16.mxu0 0
  %879 = vmatpush1.bf16.msra.mxu0 %v799
  %880 = vmatprep.mubr.bf16.mxu0 %v585
  %881 = vmatmul.mubr.bf16.gmra.mrb[0].mxu0 %v584
  %v882 = vpop.f32.mrb[0].mxu0
  %v883 = vadd.f32 0.0, %v882
  %v884 = vpop.f32.mrb[0].mxu0
  %v885 = vpop.f32.mrb[0].mxu0
  %v886 = vadd.f32 0.0, %v885
  %v887 = vpop.f32.mrb[0].mxu0
  %888 = vmatprep.mubr.bf16.mxu0 %v589
  %889 = vmatmul.mubr.bf16.gmra.mrb[0].mxu0 %v588
  %v890 = vpop.f32.mrb[0].mxu0
  %v891 = vadd.f32 0.0, %v890
  %v892 = vpop.f32.mrb[0].mxu0
  %v893 = vpop.f32.mrb[0].mxu0
  %v894 = vadd.f32 0.0, %v893
  %v895 = vpop.f32.mrb[0].mxu0
  %896 = vdwg.mxu0
  %897 = vmatprep.subr.bf16.mxu0 0
  %898 = vmatpush1.bf16.msra.mxu0 %v800
  %899 = vmatprep.subr.bf16.mxu0 0
  %900 = vmatpush1.bf16.msra.mxu0 %v801
  %901 = vmatprep.subr.bf16.mxu0 0
  %902 = vmatpush1.bf16.msra.mxu0 %v802
  %903 = vmatprep.subr.bf16.mxu0 0
  %904 = vmatpush1.bf16.msra.mxu0 %v803
  %905 = vmatprep.subr.bf16.mxu0 0
  %906 = vmatpush1.bf16.msra.mxu0 %v804
  %907 = vmatprep.subr.bf16.mxu0 0
  %908 = vmatpush1.bf16.msra.mxu0 %v805
  %909 = vmatprep.subr.bf16.mxu0 0
  %910 = vmatpush1.bf16.msra.mxu0 %v806
  %911 = vmatprep.subr.bf16.mxu0 0
  %912 = vmatpush1.bf16.msra.mxu0 %v807
  %913 = vmatprep.subr.bf16.mxu0 0
  %914 = vmatpush1.bf16.msra.mxu0 %v808
  %915 = vmatprep.subr.bf16.mxu0 0
  %916 = vmatpush1.bf16.msra.mxu0 %v809
  %917 = vmatprep.subr.bf16.mxu0 0
  %918 = vmatpush1.bf16.msra.mxu0 %v810
  %919 = vmatprep.subr.bf16.mxu0 0
  %920 = vmatpush1.bf16.msra.mxu0 %v811
  %921 = vmatprep.subr.bf16.mxu0 0
  %922 = vmatpush1.bf16.msra.mxu0 %v812
  %923 = vmatprep.subr.bf16.mxu0 0
  %924 = vmatpush1.bf16.msra.mxu0 %v813
  %925 = vmatprep.subr.bf16.mxu0 0
  %926 = vmatpush1.bf16.msra.mxu0 %v814
  %927 = vmatprep.subr.bf16.mxu0 0
  %928 = vmatpush1.bf16.msra.mxu0 %v815
  %929 = vmatprep.mubr.bf16.mxu0 %v587
  %930 = vmatmul.mubr.bf16.gmra.mrb[0].mxu0 %v586
  %v931 = vpop.f32.mrb[0].mxu0
  %v932 = vadd.f32 %v883, %v931
  %v933 = vpop.f32.mrb[0].mxu0
  %v934 = vpop.f32.mrb[0].mxu0
  %v935 = vadd.f32 %v886, %v934
  %v936 = vpop.f32.mrb[0].mxu0
  %937 = vmatprep.mubr.bf16.mxu0 %v591
  %938 = vmatmul.mubr.bf16.gmra.mrb[0].mxu0 %v590
  %v939 = vpop.f32.mrb[0].mxu0
  %v940 = vadd.f32 %v891, %v939
  %v941 = vpop.f32.mrb[0].mxu0
  %v942 = vpop.f32.mrb[0].mxu0
  %v943 = vadd.f32 %v894, %v942
  %v944 = vpop.f32.mrb[0].mxu0
  %945 = vdwg.mxu0
  %v946 = vadd.f32 %v580, %v932
  %v947 = vadd.f32 %v581, %v935
  %v948 = vadd.f32 %v582, %v940
  %v949 = vadd.f32 %v583, %v943
  %950 = vst [vmem:[#allocation2] sm:$0xff] %v946
  %951 = vst [vmem:[#allocation2 + $0x8] sm:$0xff] %v947
  %952 = vst [vmem:[#allocation2 + $0x10] sm:$0xff] %v948
  %953 = vst [vmem:[#allocation2 + $0x18] sm:$0xff] %v949
  // Predicated region
  $region34: #{_lambda_.11} parent=0 // pred_check
    %p954 = pneg %p27
  $region35: #{_lambda_.11} parent=0 // pred_check_branch
    %956 = sbr.rel (%p954) target = $region37
  $region36: #{_lambda_.11} parent=0 // pred_region
    %v957 = vld [vmem:[#allocation2] sm:$0xff]
    %v958 = vld [vmem:[#allocation2 + $0x8] sm:$0xff]
    %v959 = vld [vmem:[#allocation2 + $0x10] sm:$0xff]
    %v960 = vld [vmem:[#allocation2 + $0x18] sm:$0xff]
    %v961 = vld [vmem:[%s6] sm:$0x1]
    %v963 = vlaneseq
    %v964 = vshrl.u32 %v963, 7
    %v965 = vsub.s32 0, %v964
    %v966 = vrot.slane %v961, %v965
    %v968 = vadd.f32 %v957, %v966
    %v969 = vadd.f32 %v958, %v966
    %v970 = vadd.f32 %v959, %v966
    %v971 = vadd.f32 %v960, %v966
    %v972 = vld [vmem:[%s0] sm:$0xf]
    %v973 = vld [vmem:[%s0 + $0x4] sm:$0xf]
    %v974 = vld [vmem:[%s0 + $0x8] sm:$0xf]
    %v975 = vld [vmem:[%s0 + $0xc] sm:$0xf]
    %v976 = vunpack.c.l.bf16 %v972
    %v977 = vunpack.c.l.bf16 %v973
    %v978 = vunpack.c.l.bf16 %v974
    %v979 = vunpack.c.l.bf16 %v975
    %v980 = vadd.f32 %v968, %v976
    %v981 = vadd.f32 %v969, %v977
    %v982 = vadd.f32 %v970, %v978
    %v983 = vadd.f32 %v971, %v979
    %v984 = vpack.c.bf16 %v981, %v980
    %v985 = vpack.c.bf16 %v983, %v982
    %v988 = vunpack.c.l.b16 %v984
    %v989 = vunpack.c.h.b16 %v984
    %v990 = vunpack.c.l.b16 %v985
    %v991 = vunpack.c.h.b16 %v985
    %v992 = vpack.c.b16 %v988, %v988
    %v993 = vpack.c.b16 %v989, %v989
    %v994 = vpack.c.b16 %v990, %v990
    %v995 = vpack.c.b16 %v991, %v991
    %1000 = vst [vmem:[%s7] sm:$0xf] %v992
    %1001 = vst [vmem:[%s7 + $0x4] sm:$0xf] %v993
    %1002 = vst [vmem:[%s7 + $0x8] sm:$0xf] %v994
    %1003 = vst [vmem:[%s7 + $0xc] sm:$0xf] %v995
  $region37: #{_lambda_.11} parent=0 // pred_fallthru
    _
  // Predicated region
  $region38: #{_lambda_.11} parent=0 // pred_check
    _
  $region39: #{_lambda_.11} parent=0 // pred_check_branch
    %1005 = sbr.rel (0) target = $region41
  $region40: #{_lambda_.11} parent=0 // pred_region
    _
  $region41: #{_lambda_.11} parent=0 // pred_fallthru
    _
  // Predicated region
  $region42: #{_lambda_.11} parent=0 // pred_check
    _
  $region43: #{_lambda_.11} parent=0 // pred_check_branch
    %1007 = sbr.rel (0) target = $region45
  $region44: #{_lambda_.11} parent=0 // pred_region
    _
  $region45: #{_lambda_.11} parent=0 // pred_fallthru
    _

</llo_original>
